<compile_context>
chip_gen: v5e
topology: v5e:2x2
jax: 0.10.0
libtpu: 0.0.40
codegen_flags: <defaults>
</compile_context>

<pallas_src>
import functools

import jax
import jax.numpy as jnp
from jax.experimental import pallas as pl
from jax.experimental.pallas import tpu as pltpu


# ----------------------------------------------------------------------------
# Fused kernel: per grid step (n, i) it produces output rows [i*th, (i+1)*th).
#   xt_ref : (W, C)       row i*th - 1 of the image (halo, clamped at top)
#   xc_ref : (th*W, C)    rows [i*th, (i+1)*th) flattened
#   xb_ref : (W, C)       row (i+1)*th (halo, clamped at bottom)
#   wK     : (C, C)       1x1 conv weight (Cin, Cout), bf16
#   sK, bK : (1, C)       folded BN scale / bias, f32
#   wf_ref : (27C, C)     3x3 conv weights, tap-major (dy*3+dx)*3C + cin, bf16
#   so, bo : (1, C)       folded BN scale / bias of out_conv, f32
#   o_ref  : (th*W, C)    output rows, f32
# ----------------------------------------------------------------------------
def _our_fe_kernel(xt_ref, xc_ref, xb_ref,
                   w1_ref, s1_ref, b1_ref,
                   w2_ref, s2_ref, b2_ref,
                   w3_ref, s3_ref, b3_ref,
                   wf_ref, so_ref, bo_ref,
                   o_ref, *, th, H, W):
    i = pl.program_id(1)
    nb = H // th
    L = (th + 2) * W          # rows of the haloed tile (flattened h*W + w)
    Lo = th * W               # rows of the output tile

    # ---- haloed input tile: image rows [i*th - 1, i*th + th] ---------------
    x_tile = jnp.concatenate([xt_ref[...], xc_ref[...], xb_ref[...]], axis=0)

    # ---- three chained 1x1 conv + BN(eval) + ReLU --------------------------
    def pw(x, w_ref, s_ref, b_ref):
        z = jnp.dot(x, w_ref[...], preferred_element_type=jnp.float32)
        return jnp.maximum(z * s_ref[0] + b_ref[0], 0.0)

    o1 = pw(x_tile, w1_ref, s1_ref, b1_ref)                        # (L, C) f32
    o2 = pw(o1.astype(jnp.bfloat16), w2_ref, s2_ref, b2_ref)
    o3 = pw(o2.astype(jnp.bfloat16), w3_ref, s3_ref, b3_ref)
    cat = jnp.concatenate([o1, o2, o3], axis=-1)                   # (L, 3C) f32

    # ---- zero halo rows that fall outside the image (conv zero padding) ----
    row = jax.lax.broadcasted_iota(jnp.int32, (L, 1), 0)
    pad_top = (i == 0) & (row < W)
    pad_bot = (i == nb - 1) & (row >= (th + 1) * W)
    cat = jnp.where(pad_top | pad_bot, 0.0, cat)

    # ---- 3x3 conv as ONE matmul with K = 9*3C ------------------------------
    # Tap (dy, dx) of output pixel (r, c) reads cat row (r+dy)*W + (c+dx).
    # pltpu.roll realizes the shift on the XLU (no slice/reshape copies);
    # column masks provide the zero padding along W, the row masks above
    # provide it along H.  Any roll wrap-around lands only on masked columns.
    col = jax.lax.broadcasted_iota(jnp.int32, (Lo, 1), 0) % W
    parts = []
    for dy in range(3):
        for dx in (-1, 0, 1):
            s = dy * W + dx
            t = cat if s == 0 else pltpu.roll(cat, (-s) % L, 0)
            t = t[:Lo]
            if dx == -1:
                t = jnp.where(col >= 1, t, 0.0)
            elif dx == 1:
                t = jnp.where(col <= W - 2, t, 0.0)
            parts.append(t.astype(jnp.bfloat16))
    slab = jnp.concatenate(parts, axis=-1)                         # (Lo, 27C)

    acc = jnp.dot(slab, wf_ref[...], preferred_element_type=jnp.float32)
    o_ref[...] = jnp.maximum(acc * so_ref[0] + bo_ref[0], 0.0).astype(o_ref.dtype)


# ----------------------------------------------------------------------------
# Row-tile chooser: th must divide H (no tail), keep the per-step working set
# small (th*W rows), and prefer >=2 row tiles so the second grid axis can be
# sharded across TensorCores (v7x has 2 TCs per chip).
# ----------------------------------------------------------------------------
def _choose_row_tile(h, w, max_rows=1024):
    cands = [d for d in range(1, h + 1) if h % d == 0 and d * w <= max_rows]
    if not cands:
        return 1
    multi = [d for d in cands if h // d >= 2]
    return max(multi) if multi else max(cands)


# ----------------------------------------------------------------------------
# OurFE forward (NCHW in, NCHW out), matching the PyTorch module in eval mode.
# ----------------------------------------------------------------------------
def our_fe_forward(x_nchw, params):
    N, C, H, W = x_nchw.shape
    th = _choose_row_tile(H, W)
    nb = H // th

    x_flat = jnp.transpose(x_nchw, (0, 2, 3, 1)).reshape(N, H * W, C)
    x_flat = x_flat.astype(jnp.bfloat16)

    row_blk = lambda n, i: (n, i, 0)
    halo_top = lambda n, i: (n, jnp.maximum(i * th - 1, 0), 0)        # row above
    halo_bot = lambda n, i: (n, jnp.minimum((i + 1) * th, H - 1), 0)  # row below
    const_w = lambda n, i: (0, 0)
    vec = pl.BlockSpec((1, C), const_w)

    kern = functools.partial(_our_fe_kernel, th=th, H=H, W=W)

    out = pl.pallas_call(
        kern,
        out_shape=jax.ShapeDtypeStruct((N, H * W, C), jnp.float32),
        grid_spec=pltpu.PrefetchScalarGridSpec(
            num_scalar_prefetch=0,
            grid=(N, nb),
            in_specs=[
                pl.BlockSpec((None, W, C), halo_top),
                pl.BlockSpec((None, th * W, C), row_blk),
                pl.BlockSpec((None, W, C), halo_bot),
                pl.BlockSpec((C, C), const_w), vec, vec,
                pl.BlockSpec((C, C), const_w), vec, vec,
                pl.BlockSpec((C, C), const_w), vec, vec,
                pl.BlockSpec((9 * 3 * C, C), const_w), vec, vec,
            ],
            out_specs=pl.BlockSpec((None, th * W, C), row_blk),
        ),
        compiler_params=pltpu.CompilerParams(
            dimension_semantics=("parallel", "parallel"),
            vmem_limit_bytes=32 * 1024 * 1024),
    )(x_flat, x_flat, x_flat,
      params["w1"], params["s1"], params["b1"],
      params["w2"], params["s2"], params["b2"],
      params["w3"], params["s3"], params["b3"],
      params["w_out"], params["s_out"], params["b_out"])

    return jnp.transpose(out.reshape(N, H, W, C), (0, 3, 1, 2))


# ----------------------------------------------------------------------------
# Parameter construction (deterministic) + eval-mode BN folding.
# TODO(synk): BatchNorm training-mode statistics updates are not implemented;
# eval/inference running stats (mean=0, var=1 for a fresh module) are folded.
# ----------------------------------------------------------------------------
def _fold_bn(conv_b, gamma, beta, running_mean, running_var, eps=1e-5):
    scale = gamma / jnp.sqrt(running_var + eps)
    bias = beta + scale * (conv_b - running_mean)
    return scale[None, :].astype(jnp.float32), bias[None, :].astype(jnp.float32)


def make_params(key, channel):
    C = channel
    keys = jax.random.split(key, 16)
    p = {}
    for i in range(3):
        w = 0.1 * jax.random.normal(keys[4 * i + 0], (C, C), jnp.float32)   # (Cin, Cout)
        b = 0.1 * jax.random.normal(keys[4 * i + 1], (C,), jnp.float32)
        gamma = 1.0 + 0.1 * jax.random.normal(keys[4 * i + 2], (C,), jnp.float32)
        beta = 0.1 * jax.random.normal(keys[4 * i + 3], (C,), jnp.float32)
        s, bb = _fold_bn(b, gamma, beta, jnp.zeros((C,)), jnp.ones((C,)))
        p[f"w{i + 1}"] = w.astype(jnp.bfloat16)
        p[f"s{i + 1}"] = s
        p[f"b{i + 1}"] = bb
    # out_conv: Conv2d(3C -> C, k=3, pad=1) + BN + ReLU, weights in
    # (ky, kx, Cin=3C, Cout=C) order, flattened tap-major to (27C, C).
    w_out = 0.05 * jax.random.normal(keys[12], (3, 3, 3 * C, C), jnp.float32)
    b_out = 0.1 * jax.random.normal(keys[13], (C,), jnp.float32)
    gamma_o = 1.0 + 0.1 * jax.random.normal(keys[14], (C,), jnp.float32)
    beta_o = 0.1 * jax.random.normal(keys[15], (C,), jnp.float32)
    s_o, b_o = _fold_bn(b_out, gamma_o, beta_o, jnp.zeros((C,)), jnp.ones((C,)))
    p["w_out"] = w_out.reshape(9 * 3 * C, C).astype(jnp.bfloat16)
    p["s_out"] = s_o
    p["b_out"] = b_o
    return p


# ----------------------------------------------------------------------------
# Pure-JAX reference (f32) for a correctness sanity check.
# ----------------------------------------------------------------------------
def _our_fe_reference(x_nchw, params):
    N, C, H, W = x_nchw.shape
    x = jnp.transpose(x_nchw, (0, 2, 3, 1)).astype(jnp.float32)

    def pw(v, w, s, b):
        z = jnp.einsum("nhwc,cd->nhwd", v, w.astype(jnp.float32))
        return jnp.maximum(z * s[0] + b[0], 0.0)

    o1 = pw(x, params["w1"], params["s1"], params["b1"])
    o2 = pw(o1, params["w2"], params["s2"], params["b2"])
    o3 = pw(o2, params["w3"], params["s3"], params["b3"])
    cat = jnp.concatenate([o1, o2, o3], axis=-1)
    catp = jnp.pad(cat, ((0, 0), (1, 1), (1, 1), (0, 0)))
    w9 = params["w_out"].astype(jnp.float32).reshape(3, 3, 3 * C, C)
    acc = jnp.zeros((N, H, W, C), jnp.float32)
    for dy in range(3):
        for dx in range(3):
            acc = acc + jnp.einsum("nhwc,cd->nhwd",
                                   catp[:, dy:dy + H, dx:dx + W, :], w9[dy, dx])
    out = jnp.maximum(acc * params["s_out"][0] + params["b_out"][0], 0.0)
    return jnp.transpose(out, (0, 3, 1, 2))


if __name__ == "__main__":
    key = jax.random.PRNGKey(0)
    k_x, k_p = jax.random.split(key)

    N, C, H, W = 2, 4, 16, 16
    x = jax.random.normal(k_x, (N, C, H, W), jnp.float32)
    params = make_params(k_p, C)

    out = jax.jit(our_fe_forward)(x, params)
    out = jax.block_until_ready(out)

    assert out.shape == (N, C, H, W), out.shape
    assert bool(jnp.all(jnp.isfinite(out)))

    ref = jax.block_until_ready(_our_fe_reference(x, params))
    max_err = float(jnp.max(jnp.abs(out - ref)))
    assert max_err < 0.1, f"mismatch vs reference: max abs err {max_err}"

    print("KERNEL_OK")
</pallas_src>

<mosaic_0001>
module attributes {stable_mosaic.version = 11 : i64} {
  func.func @_our_fe_kernel(%arg0: i32, %arg1: i32, %arg2: memref<1x16x4xbf16, #tpu.memory_space<vmem>>, %arg3: memref<1x128x4xbf16, #tpu.memory_space<vmem>>, %arg4: memref<1x16x4xbf16, #tpu.memory_space<vmem>>, %arg5: memref<4x4xbf16, #tpu.memory_space<vmem>>, %arg6: memref<1x4xf32, #tpu.memory_space<vmem>>, %arg7: memref<1x4xf32, #tpu.memory_space<vmem>>, %arg8: memref<4x4xbf16, #tpu.memory_space<vmem>>, %arg9: memref<1x4xf32, #tpu.memory_space<vmem>>, %arg10: memref<1x4xf32, #tpu.memory_space<vmem>>, %arg11: memref<4x4xbf16, #tpu.memory_space<vmem>>, %arg12: memref<1x4xf32, #tpu.memory_space<vmem>>, %arg13: memref<1x4xf32, #tpu.memory_space<vmem>>, %arg14: memref<108x4xbf16, #tpu.memory_space<vmem>>, %arg15: memref<1x4xf32, #tpu.memory_space<vmem>>, %arg16: memref<1x4xf32, #tpu.memory_space<vmem>>, %arg17: memref<1x128x4xf32, #tpu.memory_space<vmem>>) attributes {dimension_semantics = [#tpu.dimension_semantics<parallel>, #tpu.dimension_semantics<parallel>], iteration_bounds = array<i64: 2, 2>, scalar_prefetch = 0 : i64, scratch_operands = 0 : i64, tpu.core_type = #tpu.core_type<tc>, window_params = [{transform_indices = @transform_0, window_bounds = array<i64: 1, 16, 4>}, {transform_indices = @transform_1, window_bounds = array<i64: 1, 128, 4>}, {transform_indices = @transform_2, window_bounds = array<i64: 1, 16, 4>}, {pipeline_mode = #tpu.pipeline_mode<synchronous>, transform_indices = @transform_3, window_bounds = array<i64: 4, 4>}, {pipeline_mode = #tpu.pipeline_mode<synchronous>, transform_indices = @transform_4, window_bounds = array<i64: 1, 4>}, {pipeline_mode = #tpu.pipeline_mode<synchronous>, transform_indices = @transform_5, window_bounds = array<i64: 1, 4>}, {pipeline_mode = #tpu.pipeline_mode<synchronous>, transform_indices = @transform_6, window_bounds = array<i64: 4, 4>}, {pipeline_mode = #tpu.pipeline_mode<synchronous>, transform_indices = @transform_7, window_bounds = array<i64: 1, 4>}, {pipeline_mode = #tpu.pipeline_mode<synchronous>, transform_indices = @transform_8, window_bounds = array<i64: 1, 4>}, {pipeline_mode = #tpu.pipeline_mode<synchronous>, transform_indices = @transform_9, window_bounds = array<i64: 4, 4>}, {pipeline_mode = #tpu.pipeline_mode<synchronous>, transform_indices = @transform_10, window_bounds = array<i64: 1, 4>}, {pipeline_mode = #tpu.pipeline_mode<synchronous>, transform_indices = @transform_11, window_bounds = array<i64: 1, 4>}, {pipeline_mode = #tpu.pipeline_mode<synchronous>, transform_indices = @transform_12, window_bounds = array<i64: 108, 4>}, {pipeline_mode = #tpu.pipeline_mode<synchronous>, transform_indices = @transform_13, window_bounds = array<i64: 1, 4>}, {pipeline_mode = #tpu.pipeline_mode<synchronous>, transform_indices = @transform_14, window_bounds = array<i64: 1, 4>}, {transform_indices = @transform_15, window_bounds = array<i64: 1, 128, 4>}]} {
    %c0 = arith.constant 0 : index
    %c0_0 = arith.constant 0 : index
    %c0_1 = arith.constant 0 : index
    %0 = vector.load %arg2[%c0, %c0_0, %c0_1] : memref<1x16x4xbf16, #tpu.memory_space<vmem>>, vector<1x16x4xbf16>
    %1 = vector.shape_cast %0 : vector<1x16x4xbf16> to vector<16x4xbf16>
    %c0_2 = arith.constant 0 : index
    %c0_3 = arith.constant 0 : index
    %c0_4 = arith.constant 0 : index
    %2 = vector.load %arg3[%c0_2, %c0_3, %c0_4] : memref<1x128x4xbf16, #tpu.memory_space<vmem>>, vector<1x128x4xbf16>
    %3 = vector.shape_cast %2 : vector<1x128x4xbf16> to vector<128x4xbf16>
    %c0_5 = arith.constant 0 : index
    %c0_6 = arith.constant 0 : index
    %c0_7 = arith.constant 0 : index
    %4 = vector.load %arg4[%c0_5, %c0_6, %c0_7] : memref<1x16x4xbf16, #tpu.memory_space<vmem>>, vector<1x16x4xbf16>
    %5 = vector.shape_cast %4 : vector<1x16x4xbf16> to vector<16x4xbf16>
    %6 = tpu.concatenate %1, %3, %5 in 0 : vector<16x4xbf16>, vector<128x4xbf16>, vector<16x4xbf16> -> vector<160x4xbf16>
    %c0_8 = arith.constant 0 : index
    %c0_9 = arith.constant 0 : index
    %7 = vector.load %arg5[%c0_8, %c0_9] : memref<4x4xbf16, #tpu.memory_space<vmem>>, vector<4x4xbf16>
    %cst = arith.constant dense<0.000000e+00> : vector<160x4xf32>
    %8 = tpu.matmul %6, %7, %cst {dimension_numbers = #tpu.dot_dimension_numbers<[1], [0], [0], [1], [0, 0, 1, 1], [], []>} : vector<160x4xbf16>, vector<4x4xbf16>, vector<160x4xf32> -> vector<160x4xf32>
    %c0_10 = arith.constant 0 : index
    %c0_11 = arith.constant 0 : index
    %9 = vector.load %arg6[%c0_10, %c0_11] : memref<1x4xf32, #tpu.memory_space<vmem>>, vector<1x4xf32>
    %10 = vector.shape_cast %9 : vector<1x4xf32> to vector<4xf32>
    %11 = vector.shape_cast %10 : vector<4xf32> to vector<1x4xf32>
    %12 = vector.broadcast %11 : vector<1x4xf32> to vector<160x4xf32>
    %13 = arith.mulf %8, %12 : vector<160x4xf32>
    %c0_12 = arith.constant 0 : index
    %c0_13 = arith.constant 0 : index
    %14 = vector.load %arg7[%c0_12, %c0_13] : memref<1x4xf32, #tpu.memory_space<vmem>>, vector<1x4xf32>
    %15 = vector.shape_cast %14 : vector<1x4xf32> to vector<4xf32>
    %16 = vector.shape_cast %15 : vector<4xf32> to vector<1x4xf32>
    %17 = vector.broadcast %16 : vector<1x4xf32> to vector<160x4xf32>
    %18 = arith.addf %13, %17 : vector<160x4xf32>
    %cst_14 = arith.constant 0.000000e+00 : f32
    %19 = vector.broadcast %cst_14 : f32 to vector<160x4xf32>
    %20 = arith.maximumf %18, %19 : vector<160x4xf32>
    %21 = arith.truncf %20 : vector<160x4xf32> to vector<160x4xbf16>
    %c0_15 = arith.constant 0 : index
    %c0_16 = arith.constant 0 : index
    %22 = vector.load %arg8[%c0_15, %c0_16] : memref<4x4xbf16, #tpu.memory_space<vmem>>, vector<4x4xbf16>
    %cst_17 = arith.constant dense<0.000000e+00> : vector<160x4xf32>
    %23 = tpu.matmul %21, %22, %cst_17 {dimension_numbers = #tpu.dot_dimension_numbers<[1], [0], [0], [1], [0, 0, 1, 1], [], []>} : vector<160x4xbf16>, vector<4x4xbf16>, vector<160x4xf32> -> vector<160x4xf32>
    %c0_18 = arith.constant 0 : index
    %c0_19 = arith.constant 0 : index
    %24 = vector.load %arg9[%c0_18, %c0_19] : memref<1x4xf32, #tpu.memory_space<vmem>>, vector<1x4xf32>
    %25 = vector.shape_cast %24 : vector<1x4xf32> to vector<4xf32>
    %26 = vector.shape_cast %25 : vector<4xf32> to vector<1x4xf32>
    %27 = vector.broadcast %26 : vector<1x4xf32> to vector<160x4xf32>
    %28 = arith.mulf %23, %27 : vector<160x4xf32>
    %c0_20 = arith.constant 0 : index
    %c0_21 = arith.constant 0 : index
    %29 = vector.load %arg10[%c0_20, %c0_21] : memref<1x4xf32, #tpu.memory_space<vmem>>, vector<1x4xf32>
    %30 = vector.shape_cast %29 : vector<1x4xf32> to vector<4xf32>
    %31 = vector.shape_cast %30 : vector<4xf32> to vector<1x4xf32>
    %32 = vector.broadcast %31 : vector<1x4xf32> to vector<160x4xf32>
    %33 = arith.addf %28, %32 : vector<160x4xf32>
    %cst_22 = arith.constant 0.000000e+00 : f32
    %34 = vector.broadcast %cst_22 : f32 to vector<160x4xf32>
    %35 = arith.maximumf %33, %34 : vector<160x4xf32>
    %36 = arith.truncf %35 : vector<160x4xf32> to vector<160x4xbf16>
    %c0_23 = arith.constant 0 : index
    %c0_24 = arith.constant 0 : index
    %37 = vector.load %arg11[%c0_23, %c0_24] : memref<4x4xbf16, #tpu.memory_space<vmem>>, vector<4x4xbf16>
    %cst_25 = arith.constant dense<0.000000e+00> : vector<160x4xf32>
    %38 = tpu.matmul %36, %37, %cst_25 {dimension_numbers = #tpu.dot_dimension_numbers<[1], [0], [0], [1], [0, 0, 1, 1], [], []>} : vector<160x4xbf16>, vector<4x4xbf16>, vector<160x4xf32> -> vector<160x4xf32>
    %c0_26 = arith.constant 0 : index
    %c0_27 = arith.constant 0 : index
    %39 = vector.load %arg12[%c0_26, %c0_27] : memref<1x4xf32, #tpu.memory_space<vmem>>, vector<1x4xf32>
    %40 = vector.shape_cast %39 : vector<1x4xf32> to vector<4xf32>
    %41 = vector.shape_cast %40 : vector<4xf32> to vector<1x4xf32>
    %42 = vector.broadcast %41 : vector<1x4xf32> to vector<160x4xf32>
    %43 = arith.mulf %38, %42 : vector<160x4xf32>
    %c0_28 = arith.constant 0 : index
    %c0_29 = arith.constant 0 : index
    %44 = vector.load %arg13[%c0_28, %c0_29] : memref<1x4xf32, #tpu.memory_space<vmem>>, vector<1x4xf32>
    %45 = vector.shape_cast %44 : vector<1x4xf32> to vector<4xf32>
    %46 = vector.shape_cast %45 : vector<4xf32> to vector<1x4xf32>
    %47 = vector.broadcast %46 : vector<1x4xf32> to vector<160x4xf32>
    %48 = arith.addf %43, %47 : vector<160x4xf32>
    %cst_30 = arith.constant 0.000000e+00 : f32
    %49 = vector.broadcast %cst_30 : f32 to vector<160x4xf32>
    %50 = arith.maximumf %48, %49 : vector<160x4xf32>
    %51 = tpu.concatenate %20, %35, %50 in 1 : vector<160x4xf32>, vector<160x4xf32>, vector<160x4xf32> -> vector<160x12xf32>
    %52 = tpu.iota {dimensions = array<i32: 0>} : vector<160x1xi32>
    %c0_i32 = arith.constant 0 : i32
    %53 = arith.cmpi eq, %arg1, %c0_i32 : i32
    %c16_i32 = arith.constant 16 : i32
    %54 = vector.broadcast %c16_i32 : i32 to vector<160x1xi32>
    %55 = arith.cmpi slt, %52, %54 : vector<160x1xi32>
    %56 = vector.broadcast %53 : i1 to vector<160x1xi1>
    %57 = arith.andi %56, %55 : vector<160x1xi1>
    %c1_i32 = arith.constant 1 : i32
    %58 = arith.cmpi eq, %arg1, %c1_i32 : i32
    %c144_i32 = arith.constant 144 : i32
    %59 = vector.broadcast %c144_i32 : i32 to vector<160x1xi32>
    %60 = arith.cmpi sge, %52, %59 : vector<160x1xi32>
    %61 = vector.broadcast %58 : i1 to vector<160x1xi1>
    %62 = arith.andi %61, %60 : vector<160x1xi1>
    %63 = arith.ori %57, %62 : vector<160x1xi1>
    %cst_31 = arith.constant 0.000000e+00 : f32
    %64 = vector.shape_cast %63 : vector<160x1xi1> to vector<160x1xi1>
    %65 = vector.broadcast %64 : vector<160x1xi1> to vector<160x12xi1>
    %66 = vector.broadcast %cst_31 : f32 to vector<160x12xf32>
    %67 = arith.select %65, %66, %51 : vector<160x12xi1>, vector<160x12xf32>
    %68 = tpu.iota {dimensions = array<i32: 0>} : vector<128x1xi32>
    %c16_i32_32 = arith.constant 16 : i32
    %c0_i32_33 = arith.constant 0 : i32
    %69 = arith.cmpi eq, %c16_i32_32, %c0_i32_33 : i32
    %c1_i32_34 = arith.constant 1 : i32
    %70 = arith.select %69, %c1_i32_34, %c16_i32_32 : i32
    %71 = vector.broadcast %70 : i32 to vector<128x1xi32>
    %72 = arith.remsi %68, %71 : vector<128x1xi32>
    %c0_i32_35 = arith.constant 0 : i32
    %73 = vector.broadcast %c0_i32_35 : i32 to vector<128x1xi32>
    %74 = arith.cmpi ne, %72, %73 : vector<128x1xi32>
    %c0_i32_36 = arith.constant 0 : i32
    %75 = vector.broadcast %c0_i32_36 : i32 to vector<128x1xi32>
    %76 = arith.cmpi slt, %72, %75 : vector<128x1xi32>
    %c0_i32_37 = arith.constant 0 : i32
    %77 = arith.cmpi slt, %70, %c0_i32_37 : i32
    %78 = vector.broadcast %77 : i1 to vector<128x1xi1>
    %79 = vector.broadcast %78 : vector<128x1xi1> to vector<128x1xi1>
    %80 = arith.xori %76, %79 : vector<128x1xi1>
    %81 = arith.andi %80, %74 : vector<128x1xi1>
    %82 = vector.broadcast %70 : i32 to vector<128x1xi32>
    %83 = arith.addi %72, %82 : vector<128x1xi32>
    %84 = arith.select %81, %83, %72 : vector<128x1xi1>, vector<128x1xi32>
    %c1_i32_38 = arith.constant 1 : i32
    %85 = tpu.dynamic_rotate %67 by %c1_i32_38 dim 0 : vector<160x12xf32>, i32 -> vector<160x12xf32>
    %86 = vector.extract_strided_slice %85 {offsets = [0, 0], sizes = [128, 12], strides = [1, 1]} : vector<160x12xf32> to vector<128x12xf32>
    %c1_i32_39 = arith.constant 1 : i32
    %87 = vector.broadcast %c1_i32_39 : i32 to vector<128x1xi32>
    %88 = arith.cmpi sge, %84, %87 : vector<128x1xi32>
    %cst_40 = arith.constant 0.000000e+00 : f32
    %89 = vector.shape_cast %88 : vector<128x1xi1> to vector<128x1xi1>
    %90 = vector.broadcast %89 : vector<128x1xi1> to vector<128x12xi1>
    %91 = vector.broadcast %cst_40 : f32 to vector<128x12xf32>
    %92 = arith.select %90, %86, %91 : vector<128x12xi1>, vector<128x12xf32>
    %93 = arith.truncf %92 : vector<128x12xf32> to vector<128x12xbf16>
    %94 = vector.extract_strided_slice %67 {offsets = [0, 0], sizes = [128, 12], strides = [1, 1]} : vector<160x12xf32> to vector<128x12xf32>
    %95 = arith.truncf %94 : vector<128x12xf32> to vector<128x12xbf16>
    %c159_i32 = arith.constant 159 : i32
    %96 = tpu.dynamic_rotate %67 by %c159_i32 dim 0 : vector<160x12xf32>, i32 -> vector<160x12xf32>
    %97 = vector.extract_strided_slice %96 {offsets = [0, 0], sizes = [128, 12], strides = [1, 1]} : vector<160x12xf32> to vector<128x12xf32>
    %c14_i32 = arith.constant 14 : i32
    %98 = vector.broadcast %c14_i32 : i32 to vector<128x1xi32>
    %99 = arith.cmpi sle, %84, %98 : vector<128x1xi32>
    %cst_41 = arith.constant 0.000000e+00 : f32
    %100 = vector.shape_cast %99 : vector<128x1xi1> to vector<128x1xi1>
    %101 = vector.broadcast %100 : vector<128x1xi1> to vector<128x12xi1>
    %102 = vector.broadcast %cst_41 : f32 to vector<128x12xf32>
    %103 = arith.select %101, %97, %102 : vector<128x12xi1>, vector<128x12xf32>
    %104 = arith.truncf %103 : vector<128x12xf32> to vector<128x12xbf16>
    %c145_i32 = arith.constant 145 : i32
    %105 = tpu.dynamic_rotate %67 by %c145_i32 dim 0 : vector<160x12xf32>, i32 -> vector<160x12xf32>
    %106 = vector.extract_strided_slice %105 {offsets = [0, 0], sizes = [128, 12], strides = [1, 1]} : vector<160x12xf32> to vector<128x12xf32>
    %c1_i32_42 = arith.constant 1 : i32
    %107 = vector.broadcast %c1_i32_42 : i32 to vector<128x1xi32>
    %108 = arith.cmpi sge, %84, %107 : vector<128x1xi32>
    %cst_43 = arith.constant 0.000000e+00 : f32
    %109 = vector.shape_cast %108 : vector<128x1xi1> to vector<128x1xi1>
    %110 = vector.broadcast %109 : vector<128x1xi1> to vector<128x12xi1>
    %111 = vector.broadcast %cst_43 : f32 to vector<128x12xf32>
    %112 = arith.select %110, %106, %111 : vector<128x12xi1>, vector<128x12xf32>
    %113 = arith.truncf %112 : vector<128x12xf32> to vector<128x12xbf16>
    %c144_i32_44 = arith.constant 144 : i32
    %114 = tpu.dynamic_rotate %67 by %c144_i32_44 dim 0 : vector<160x12xf32>, i32 -> vector<160x12xf32>
    %115 = vector.extract_strided_slice %114 {offsets = [0, 0], sizes = [128, 12], strides = [1, 1]} : vector<160x12xf32> to vector<128x12xf32>
    %116 = arith.truncf %115 : vector<128x12xf32> to vector<128x12xbf16>
    %c143_i32 = arith.constant 143 : i32
    %117 = tpu.dynamic_rotate %67 by %c143_i32 dim 0 : vector<160x12xf32>, i32 -> vector<160x12xf32>
    %118 = vector.extract_strided_slice %117 {offsets = [0, 0], sizes = [128, 12], strides = [1, 1]} : vector<160x12xf32> to vector<128x12xf32>
    %c14_i32_45 = arith.constant 14 : i32
    %119 = vector.broadcast %c14_i32_45 : i32 to vector<128x1xi32>
    %120 = arith.cmpi sle, %84, %119 : vector<128x1xi32>
    %cst_46 = arith.constant 0.000000e+00 : f32
    %121 = vector.shape_cast %120 : vector<128x1xi1> to vector<128x1xi1>
    %122 = vector.broadcast %121 : vector<128x1xi1> to vector<128x12xi1>
    %123 = vector.broadcast %cst_46 : f32 to vector<128x12xf32>
    %124 = arith.select %122, %118, %123 : vector<128x12xi1>, vector<128x12xf32>
    %125 = arith.truncf %124 : vector<128x12xf32> to vector<128x12xbf16>
    %c129_i32 = arith.constant 129 : i32
    %126 = tpu.dynamic_rotate %67 by %c129_i32 dim 0 : vector<160x12xf32>, i32 -> vector<160x12xf32>
    %127 = vector.extract_strided_slice %126 {offsets = [0, 0], sizes = [128, 12], strides = [1, 1]} : vector<160x12xf32> to vector<128x12xf32>
    %c1_i32_47 = arith.constant 1 : i32
    %128 = vector.broadcast %c1_i32_47 : i32 to vector<128x1xi32>
    %129 = arith.cmpi sge, %84, %128 : vector<128x1xi32>
    %cst_48 = arith.constant 0.000000e+00 : f32
    %130 = vector.shape_cast %129 : vector<128x1xi1> to vector<128x1xi1>
    %131 = vector.broadcast %130 : vector<128x1xi1> to vector<128x12xi1>
    %132 = vector.broadcast %cst_48 : f32 to vector<128x12xf32>
    %133 = arith.select %131, %127, %132 : vector<128x12xi1>, vector<128x12xf32>
    %134 = arith.truncf %133 : vector<128x12xf32> to vector<128x12xbf16>
    %c128_i32 = arith.constant 128 : i32
    %135 = tpu.dynamic_rotate %67 by %c128_i32 dim 0 : vector<160x12xf32>, i32 -> vector<160x12xf32>
    %136 = vector.extract_strided_slice %135 {offsets = [0, 0], sizes = [128, 12], strides = [1, 1]} : vector<160x12xf32> to vector<128x12xf32>
    %137 = arith.truncf %136 : vector<128x12xf32> to vector<128x12xbf16>
    %c127_i32 = arith.constant 127 : i32
    %138 = tpu.dynamic_rotate %67 by %c127_i32 dim 0 : vector<160x12xf32>, i32 -> vector<160x12xf32>
    %139 = vector.extract_strided_slice %138 {offsets = [0, 0], sizes = [128, 12], strides = [1, 1]} : vector<160x12xf32> to vector<128x12xf32>
    %c14_i32_49 = arith.constant 14 : i32
    %140 = vector.broadcast %c14_i32_49 : i32 to vector<128x1xi32>
    %141 = arith.cmpi sle, %84, %140 : vector<128x1xi32>
    %cst_50 = arith.constant 0.000000e+00 : f32
    %142 = vector.shape_cast %141 : vector<128x1xi1> to vector<128x1xi1>
    %143 = vector.broadcast %142 : vector<128x1xi1> to vector<128x12xi1>
    %144 = vector.broadcast %cst_50 : f32 to vector<128x12xf32>
    %145 = arith.select %143, %139, %144 : vector<128x12xi1>, vector<128x12xf32>
    %146 = arith.truncf %145 : vector<128x12xf32> to vector<128x12xbf16>
    %147 = tpu.concatenate %93, %95, %104, %113, %116, %125, %134, %137, %146 in 1 : vector<128x12xbf16>, vector<128x12xbf16>, vector<128x12xbf16>, vector<128x12xbf16>, vector<128x12xbf16>, vector<128x12xbf16>, vector<128x12xbf16>, vector<128x12xbf16>, vector<128x12xbf16> -> vector<128x108xbf16>
    %c0_51 = arith.constant 0 : index
    %c0_52 = arith.constant 0 : index
    %148 = vector.load %arg14[%c0_51, %c0_52] : memref<108x4xbf16, #tpu.memory_space<vmem>>, vector<108x4xbf16>
    %cst_53 = arith.constant dense<0.000000e+00> : vector<128x4xf32>
    %149 = tpu.matmul %147, %148, %cst_53 {dimension_numbers = #tpu.dot_dimension_numbers<[1], [0], [0], [1], [0, 0, 1, 1], [], []>} : vector<128x108xbf16>, vector<108x4xbf16>, vector<128x4xf32> -> vector<128x4xf32>
    %c0_54 = arith.constant 0 : index
    %c0_55 = arith.constant 0 : index
    %150 = vector.load %arg15[%c0_54, %c0_55] : memref<1x4xf32, #tpu.memory_space<vmem>>, vector<1x4xf32>
    %151 = vector.shape_cast %150 : vector<1x4xf32> to vector<4xf32>
    %152 = vector.shape_cast %151 : vector<4xf32> to vector<1x4xf32>
    %153 = vector.broadcast %152 : vector<1x4xf32> to vector<128x4xf32>
    %154 = arith.mulf %149, %153 : vector<128x4xf32>
    %c0_56 = arith.constant 0 : index
    %c0_57 = arith.constant 0 : index
    %155 = vector.load %arg16[%c0_56, %c0_57] : memref<1x4xf32, #tpu.memory_space<vmem>>, vector<1x4xf32>
    %156 = vector.shape_cast %155 : vector<1x4xf32> to vector<4xf32>
    %157 = vector.shape_cast %156 : vector<4xf32> to vector<1x4xf32>
    %158 = vector.broadcast %157 : vector<1x4xf32> to vector<128x4xf32>
    %159 = arith.addf %154, %158 : vector<128x4xf32>
    %cst_58 = arith.constant 0.000000e+00 : f32
    %160 = vector.broadcast %cst_58 : f32 to vector<128x4xf32>
    %161 = arith.maximumf %159, %160 : vector<128x4xf32>
    %c0_59 = arith.constant 0 : index
    %c0_60 = arith.constant 0 : index
    %c0_61 = arith.constant 0 : index
    %162 = vector.load %arg17[%c0_59, %c0_60, %c0_61] : memref<1x128x4xf32, #tpu.memory_space<vmem>>, vector<1x128x4xf32>
    %163 = vector.shape_cast %162 : vector<1x128x4xf32> to vector<128x4xf32>
    %164 = vector.shape_cast %161 : vector<128x4xf32> to vector<1x128x4xf32>
    tpu.vector_store %arg17[%c0_59, %c0_60, %c0_61], %164 {strides = array<i32>} : memref<1x128x4xf32, #tpu.memory_space<vmem>>, vector<1x128x4xf32>,
    return
  }
  func.func @transform_0(%arg0: i32, %arg1: i32) -> (i32, i32, i32) {
    %c8_i32 = arith.constant 8 : i32
    %0 = arith.muli %arg1, %c8_i32 : i32
    %c1_i32 = arith.constant 1 : i32
    %1 = arith.subi %0, %c1_i32 : i32
    %c0_i32 = arith.constant 0 : i32
    %2 = arith.maxsi %1, %c0_i32 : i32
    %c0_i32_0 = arith.constant 0 : i32
    %c0_i32_1 = arith.constant 0 : i32
    return %arg0, %2, %c0_i32_0 : i32, i32, i32
  }
  func.func @transform_1(%arg0: i32, %arg1: i32) -> (i32, i32, i32) {
    %c0_i32 = arith.constant 0 : i32
    %c0_i32_0 = arith.constant 0 : i32
    return %arg0, %arg1, %c0_i32 : i32, i32, i32
  }
  func.func @transform_2(%arg0: i32, %arg1: i32) -> (i32, i32, i32) {
    %c1_i32 = arith.constant 1 : i32
    %0 = arith.addi %arg1, %c1_i32 : i32
    %c8_i32 = arith.constant 8 : i32
    %1 = arith.muli %0, %c8_i32 : i32
    %c15_i32 = arith.constant 15 : i32
    %2 = arith.minsi %1, %c15_i32 : i32
    %c0_i32 = arith.constant 0 : i32
    %c0_i32_0 = arith.constant 0 : i32
    return %arg0, %2, %c0_i32 : i32, i32, i32
  }
  func.func @transform_3(%arg0: i32, %arg1: i32) -> (i32, i32) {
    %c0_i32 = arith.constant 0 : i32
    %c0_i32_0 = arith.constant 0 : i32
    %c0_i32_1 = arith.constant 0 : i32
    return %c0_i32, %c0_i32_0 : i32, i32
  }
  func.func @transform_4(%arg0: i32, %arg1: i32) -> (i32, i32) {
    %c0_i32 = arith.constant 0 : i32
    %c0_i32_0 = arith.constant 0 : i32
    %c0_i32_1 = arith.constant 0 : i32
    return %c0_i32, %c0_i32_0 : i32, i32
  }
  func.func @transform_5(%arg0: i32, %arg1: i32) -> (i32, i32) {
    %c0_i32 = arith.constant 0 : i32
    %c0_i32_0 = arith.constant 0 : i32
    %c0_i32_1 = arith.constant 0 : i32
    return %c0_i32, %c0_i32_0 : i32, i32
  }
  func.func @transform_6(%arg0: i32, %arg1: i32) -> (i32, i32) {
    %c0_i32 = arith.constant 0 : i32
    %c0_i32_0 = arith.constant 0 : i32
    %c0_i32_1 = arith.constant 0 : i32
    return %c0_i32, %c0_i32_0 : i32, i32
  }
  func.func @transform_7(%arg0: i32, %arg1: i32) -> (i32, i32) {
    %c0_i32 = arith.constant 0 : i32
    %c0_i32_0 = arith.constant 0 : i32
    %c0_i32_1 = arith.constant 0 : i32
    return %c0_i32, %c0_i32_0 : i32, i32
  }
  func.func @transform_8(%arg0: i32, %arg1: i32) -> (i32, i32) {
    %c0_i32 = arith.constant 0 : i32
    %c0_i32_0 = arith.constant 0 : i32
    %c0_i32_1 = arith.constant 0 : i32
    return %c0_i32, %c0_i32_0 : i32, i32
  }
  func.func @transform_9(%arg0: i32, %arg1: i32) -> (i32, i32) {
    %c0_i32 = arith.constant 0 : i32
    %c0_i32_0 = arith.constant 0 : i32
    %c0_i32_1 = arith.constant 0 : i32
    return %c0_i32, %c0_i32_0 : i32, i32
  }
  func.func @transform_10(%arg0: i32, %arg1: i32) -> (i32, i32) {
    %c0_i32 = arith.constant 0 : i32
    %c0_i32_0 = arith.constant 0 : i32
    %c0_i32_1 = arith.constant 0 : i32
    return %c0_i32, %c0_i32_0 : i32, i32
  }
  func.func @transform_11(%arg0: i32, %arg1: i32) -> (i32, i32) {
    %c0_i32 = arith.constant 0 : i32
    %c0_i32_0 = arith.constant 0 : i32
    %c0_i32_1 = arith.constant 0 : i32
    return %c0_i32, %c0_i32_0 : i32, i32
  }
  func.func @transform_12(%arg0: i32, %arg1: i32) -> (i32, i32) {
    %c0_i32 = arith.constant 0 : i32
    %c0_i32_0 = arith.constant 0 : i32
    %c0_i32_1 = arith.constant 0 : i32
    return %c0_i32, %c0_i32_0 : i32, i32
  }
  func.func @transform_13(%arg0: i32, %arg1: i32) -> (i32, i32) {
    %c0_i32 = arith.constant 0 : i32
    %c0_i32_0 = arith.constant 0 : i32
    %c0_i32_1 = arith.constant 0 : i32
    return %c0_i32, %c0_i32_0 : i32, i32
  }
  func.func @transform_14(%arg0: i32, %arg1: i32) -> (i32, i32) {
    %c0_i32 = arith.constant 0 : i32
    %c0_i32_0 = arith.constant 0 : i32
    %c0_i32_1 = arith.constant 0 : i32
    return %c0_i32, %c0_i32_0 : i32, i32
  }
  func.func @transform_15(%arg0: i32, %arg1: i32) -> (i32, i32, i32) {
    %c0_i32 = arith.constant 0 : i32
    %c0_i32_0 = arith.constant 0 : i32
    return %arg0, %arg1, %c0_i32 : i32, i32, i32
  }
}

</mosaic_0001>

<llo_original>
// kernel: our_fe_forward.1
$region0: #{our_fe_forward.1}
  #allocation0 [shape = 'u32[]', space=smem, size = 0x4, offset = 0x4, fixed_abs, tag = 'smem constant byte address 0x4 - core index']
  #allocation1 [shape = 'u32[72,128]{1,0:T(1,128)}', space=vmem, size = 0x9000, scoped, tag = 'internal scratch']
  %s0 = inlined_call_operand.vmem [shape: bf16[2,256,4], index: 0, kind: input, shape index: {}, may-alias: {0,1,2}]
  %s1 = inlined_call_operand.vmem [shape: bf16[2,256,4], index: 1, kind: input, shape index: {}, may-alias: {0,1,2}]
  %s2 = inlined_call_operand.vmem [shape: bf16[2,256,4], index: 2, kind: input, shape index: {}, may-alias: {0,1,2}]
  %s3 = inlined_call_operand.vmem [shape: bf16[4,4], index: 3, kind: input, shape index: {}]
  %s4 = inlined_call_operand.vmem [shape: f32[1,4], index: 4, kind: input, shape index: {}]
  %s5 = inlined_call_operand.vmem [shape: f32[1,4], index: 5, kind: input, shape index: {}]
  %s6 = inlined_call_operand.vmem [shape: bf16[4,4], index: 6, kind: input, shape index: {}]
  %s7 = inlined_call_operand.vmem [shape: f32[1,4], index: 7, kind: input, shape index: {}]
  %s8 = inlined_call_operand.vmem [shape: f32[1,4], index: 8, kind: input, shape index: {}]
  %s9 = inlined_call_operand.vmem [shape: bf16[4,4], index: 9, kind: input, shape index: {}]
  %s10 = inlined_call_operand.vmem [shape: f32[1,4], index: 10, kind: input, shape index: {}]
  %s11 = inlined_call_operand.vmem [shape: f32[1,4], index: 11, kind: input, shape index: {}]
  %s12 = inlined_call_operand.vmem [shape: bf16[108,4], index: 12, kind: input, shape index: {}]
  %s13 = inlined_call_operand.vmem [shape: f32[1,4], index: 13, kind: input, shape index: {}]
  %s14 = inlined_call_operand.vmem [shape: f32[1,4], index: 14, kind: input, shape index: {}]
  %s15 = inlined_call_operand.vmem [shape: f32[2,256,4], index: 15, kind: output, shape index: {}]
  %s16 = sld [smem:[#allocation0]]
  $region93: #{our_fe_forward.1} parent=0
    _
  %s18 = ssub.s32 1, %s16
  %s19 = scalar_select 0, %s18, %s16
  loop: start=0, step=1, limit=6
  $region2: #{our_fe_forward.1} parent=0 // loop_pre_header
    _
  $region3: #{our_fe_forward.1} parent=0 // loop_header
    %s21 = sphi 0, %s25
    %p22 = scmp.ge.s32.totalorder %s21, 6
    %s28 = sphi 0, %s40
    %s29 = sphi 0, %s36
    %s30 = sphi 0, %s28
    %s31 = sphi 0, %s29
    %s32 = sphi 0, %s30
    %s33 = sphi 0, %s31
    %s53 = sphi 0, %s55
    %s56 = sphi 0, %s53
    %s57 = sphi 0, %s56
    %s73 = sphi 0, %s57
    %s81 = sphi 0, %s83
    %s84 = sphi 0, %s81
    %s85 = sphi 0, %s84
    %s101 = sphi 0, %s85
    %s117 = sphi 0, %s119
    %s120 = sphi 0, %s117
    %s121 = sphi 0, %s120
    %s137 = sphi 0, %s121
    %s141 = sphi 0, %s141
    %s143 = sphi 0, %s141
    %s144 = sphi 0, %s143
    %s158 = sphi 0, %s144
    %s162 = sphi 0, %s162
    %s164 = sphi 0, %s162
    %s165 = sphi 0, %s164
    %s179 = sphi 0, %s165
    %s183 = sphi 0, %s183
    %s185 = sphi 0, %s183
    %s186 = sphi 0, %s185
    %s200 = sphi 0, %s186
    %s204 = sphi 0, %s204
    %s206 = sphi 0, %s204
    %s207 = sphi 0, %s206
    %s221 = sphi 0, %s207
    %s225 = sphi 0, %s225
    %s227 = sphi 0, %s225
    %s228 = sphi 0, %s227
    %s242 = sphi 0, %s228
    %s246 = sphi 0, %s246
    %s248 = sphi 0, %s246
    %s249 = sphi 0, %s248
    %s263 = sphi 0, %s249
    %s267 = sphi 0, %s267
    %s269 = sphi 0, %s267
    %s270 = sphi 0, %s269
    %s284 = sphi 0, %s270
    %s288 = sphi 0, %s288
    %s290 = sphi 0, %s288
    %s291 = sphi 0, %s290
    %s305 = sphi 0, %s291
    %s309 = sphi 0, %s309
    %s311 = sphi 0, %s309
    %s312 = sphi 0, %s311
    %s326 = sphi 0, %s312
    %s330 = sphi 0, %s330
    %s332 = sphi 0, %s330
    %s333 = sphi 0, %s332
    %s347 = sphi 0, %s333
    %s351 = sphi 0, %s351
    %s353 = sphi 0, %s351
    %s354 = sphi 0, %s353
    %s368 = sphi 0, %s354
    %s372 = sphi 0, %s372
    %s374 = sphi 0, %s372
    %s375 = sphi 0, %s374
    %s389 = sphi 0, %s375
    %s397 = sphi 0, %s399
    %s400 = sphi 0, %s397
    %s401 = sphi 0, %s400
    %s417 = sphi 0, %s401
  $region4: #{our_fe_forward.1} parent=0 // loop_header_branch
    %24 = sbr.rel (%p22) target = $region8
  $region5: #{our_fe_forward.1} parent=0 // loop_body
    %s26 = ssub.s32 %s21, 1
    %s27 = ssub.s32 %s21, 2
    %s34 = sadd.s32 1, %s29
    %p35 = scmp.ge.s32.totalorder %s34, 2
    %s36 = scalar_select %p35, 0, %s34
    %s37 = sadd.s32 1, %s28
    %s38 = scalar_select %p35, %s37, %s28
    %p39 = scmp.ge.s32.totalorder %s38, 2
    %s40 = scalar_select %p39, 0, %s38
    %s41 = smul.u32 %s29, 8
    %s42 = ssub.s32 %s41, 1
    %p43 = scmp.gt.s32.totalorder %s42, 0
    %s44 = scalar_select %p43, %s42, 0
    %s45 = smul.u32 %s36, 8
    %s46 = ssub.s32 %s45, 1
    %p47 = scmp.gt.s32.totalorder %s46, 0
    %s48 = scalar_select %p47, %s46, 0
    %s49 = ssub.s32 %s28, %s40
    %s50 = ssub.s32 %s44, %s48
    %s51 = sor.u32 %s49, %s50
    %p52 = scmp.eq.s32.totalorder %s51, 0
    %s54 = sadd.s32 %s53, 1
    %s55 = scalar_select %p52, %s53, %s54
    %p58 = pneg %p52
    %p59 = scmp.eq.s32.totalorder %s21, 3
    %p60 = por %p58, %p59
    %p61 = scmp.ne.s32.totalorder %s53, %s56
    %p62 = scmp.eq.s32.totalorder %s21, 0
    %p63 = por %p61, %p62
    %p64 = scmp.ne.s32.totalorder %s53, %s56
    %p65 = scmp.eq.s32.totalorder %s26, 3
    %p66 = por %p64, %p65
    %p67 = scmp.ne.s32.totalorder %s56, %s57
    %p68 = scmp.eq.s32.totalorder %s26, 0
    %p69 = por %p67, %p68
    %p70 = scmp.ne.s32.totalorder %s56, %s57
    %p71 = scmp.eq.s32.totalorder %s27, 3
    %p72 = por %p70, %p71
    %p74 = scmp.ne.s32.totalorder %s57, %s73
    %p75 = scmp.eq.s32.totalorder %s27, 0
    %p76 = por %p74, %p75
    %s77 = ssub.s32 %s28, %s40
    %s78 = ssub.s32 %s29, %s36
    %s79 = sor.u32 %s77, %s78
    %p80 = scmp.eq.s32.totalorder %s79, 0
    %s82 = sadd.s32 %s81, 1
    %s83 = scalar_select %p80, %s81, %s82
    %p86 = pneg %p80
    %p87 = scmp.eq.s32.totalorder %s21, 3
    %p88 = por %p86, %p87
    %p89 = scmp.ne.s32.totalorder %s81, %s84
    %p90 = scmp.eq.s32.totalorder %s21, 0
    %p91 = por %p89, %p90
    %p92 = scmp.ne.s32.totalorder %s81, %s84
    %p93 = scmp.eq.s32.totalorder %s26, 3
    %p94 = por %p92, %p93
    %p95 = scmp.ne.s32.totalorder %s84, %s85
    %p96 = scmp.eq.s32.totalorder %s26, 0
    %p97 = por %p95, %p96
    %p98 = scmp.ne.s32.totalorder %s84, %s85
    %p99 = scmp.eq.s32.totalorder %s27, 3
    %p100 = por %p98, %p99
    %p102 = scmp.ne.s32.totalorder %s85, %s101
    %p103 = scmp.eq.s32.totalorder %s27, 0
    %p104 = por %p102, %p103
    %s105 = sadd.s32 %s29, 1
    %s106 = smul.u32 %s105, 8
    %p107 = scmp.lt.s32.totalorder %s106, 15
    %s108 = scalar_select %p107, %s106, 15
    %s109 = sadd.s32 %s36, 1
    %s110 = smul.u32 %s109, 8
    %p111 = scmp.lt.s32.totalorder %s110, 15
    %s112 = scalar_select %p111, %s110, 15
    %s113 = ssub.s32 %s28, %s40
    %s114 = ssub.s32 %s108, %s112
    %s115 = sor.u32 %s113, %s114
    %p116 = scmp.eq.s32.totalorder %s115, 0
    %s118 = sadd.s32 %s117, 1
    %s119 = scalar_select %p116, %s117, %s118
    %p122 = pneg %p116
    %p123 = scmp.eq.s32.totalorder %s21, 3
    %p124 = por %p122, %p123
    %p125 = scmp.ne.s32.totalorder %s117, %s120
    %p126 = scmp.eq.s32.totalorder %s21, 0
    %p127 = por %p125, %p126
    %p128 = scmp.ne.s32.totalorder %s117, %s120
    %p129 = scmp.eq.s32.totalorder %s26, 3
    %p130 = por %p128, %p129
    %p131 = scmp.ne.s32.totalorder %s120, %s121
    %p132 = scmp.eq.s32.totalorder %s26, 0
    %p133 = por %p131, %p132
    %p134 = scmp.ne.s32.totalorder %s120, %s121
    %p135 = scmp.eq.s32.totalorder %s27, 3
    %p136 = por %p134, %p135
    %p138 = scmp.ne.s32.totalorder %s121, %s137
    %p139 = scmp.eq.s32.totalorder %s27, 0
    %p140 = por %p138, %p139
    %s142 = sadd.s32 %s141, 1
    %p145 = scmp.eq.s32.totalorder %s21, 3
    %p146 = scmp.ne.s32.totalorder %s141, %s143
    %p147 = scmp.eq.s32.totalorder %s21, 0
    %p148 = por %p146, %p147
    %p149 = scmp.ne.s32.totalorder %s141, %s143
    %p150 = scmp.eq.s32.totalorder %s26, 3
    %p151 = por %p149, %p150
    %p152 = scmp.ne.s32.totalorder %s143, %s144
    %p153 = scmp.eq.s32.totalorder %s26, 0
    %p154 = por %p152, %p153
    %p155 = scmp.ne.s32.totalorder %s143, %s144
    %p156 = scmp.eq.s32.totalorder %s27, 3
    %p157 = por %p155, %p156
    %p159 = scmp.ne.s32.totalorder %s144, %s158
    %p160 = scmp.eq.s32.totalorder %s27, 0
    %p161 = por %p159, %p160
    %s163 = sadd.s32 %s162, 1
    %p166 = scmp.eq.s32.totalorder %s21, 3
    %p167 = scmp.ne.s32.totalorder %s162, %s164
    %p168 = scmp.eq.s32.totalorder %s21, 0
    %p169 = por %p167, %p168
    %p170 = scmp.ne.s32.totalorder %s162, %s164
    %p171 = scmp.eq.s32.totalorder %s26, 3
    %p172 = por %p170, %p171
    %p173 = scmp.ne.s32.totalorder %s164, %s165
    %p174 = scmp.eq.s32.totalorder %s26, 0
    %p175 = por %p173, %p174
    %p176 = scmp.ne.s32.totalorder %s164, %s165
    %p177 = scmp.eq.s32.totalorder %s27, 3
    %p178 = por %p176, %p177
    %p180 = scmp.ne.s32.totalorder %s165, %s179
    %p181 = scmp.eq.s32.totalorder %s27, 0
    %p182 = por %p180, %p181
    %s184 = sadd.s32 %s183, 1
    %p187 = scmp.eq.s32.totalorder %s21, 3
    %p188 = scmp.ne.s32.totalorder %s183, %s185
    %p189 = scmp.eq.s32.totalorder %s21, 0
    %p190 = por %p188, %p189
    %p191 = scmp.ne.s32.totalorder %s183, %s185
    %p192 = scmp.eq.s32.totalorder %s26, 3
    %p193 = por %p191, %p192
    %p194 = scmp.ne.s32.totalorder %s185, %s186
    %p195 = scmp.eq.s32.totalorder %s26, 0
    %p196 = por %p194, %p195
    %p197 = scmp.ne.s32.totalorder %s185, %s186
    %p198 = scmp.eq.s32.totalorder %s27, 3
    %p199 = por %p197, %p198
    %p201 = scmp.ne.s32.totalorder %s186, %s200
    %p202 = scmp.eq.s32.totalorder %s27, 0
    %p203 = por %p201, %p202
    %s205 = sadd.s32 %s204, 1
    %p208 = scmp.eq.s32.totalorder %s21, 3
    %p209 = scmp.ne.s32.totalorder %s204, %s206
    %p210 = scmp.eq.s32.totalorder %s21, 0
    %p211 = por %p209, %p210
    %p212 = scmp.ne.s32.totalorder %s204, %s206
    %p213 = scmp.eq.s32.totalorder %s26, 3
    %p214 = por %p212, %p213
    %p215 = scmp.ne.s32.totalorder %s206, %s207
    %p216 = scmp.eq.s32.totalorder %s26, 0
    %p217 = por %p215, %p216
    %p218 = scmp.ne.s32.totalorder %s206, %s207
    %p219 = scmp.eq.s32.totalorder %s27, 3
    %p220 = por %p218, %p219
    %p222 = scmp.ne.s32.totalorder %s207, %s221
    %p223 = scmp.eq.s32.totalorder %s27, 0
    %p224 = por %p222, %p223
    %s226 = sadd.s32 %s225, 1
    %p229 = scmp.eq.s32.totalorder %s21, 3
    %p230 = scmp.ne.s32.totalorder %s225, %s227
    %p231 = scmp.eq.s32.totalorder %s21, 0
    %p232 = por %p230, %p231
    %p233 = scmp.ne.s32.totalorder %s225, %s227
    %p234 = scmp.eq.s32.totalorder %s26, 3
    %p235 = por %p233, %p234
    %p236 = scmp.ne.s32.totalorder %s227, %s228
    %p237 = scmp.eq.s32.totalorder %s26, 0
    %p238 = por %p236, %p237
    %p239 = scmp.ne.s32.totalorder %s227, %s228
    %p240 = scmp.eq.s32.totalorder %s27, 3
    %p241 = por %p239, %p240
    %p243 = scmp.ne.s32.totalorder %s228, %s242
    %p244 = scmp.eq.s32.totalorder %s27, 0
    %p245 = por %p243, %p244
    %s247 = sadd.s32 %s246, 1
    %p250 = scmp.eq.s32.totalorder %s21, 3
    %p251 = scmp.ne.s32.totalorder %s246, %s248
    %p252 = scmp.eq.s32.totalorder %s21, 0
    %p253 = por %p251, %p252
    %p254 = scmp.ne.s32.totalorder %s246, %s248
    %p255 = scmp.eq.s32.totalorder %s26, 3
    %p256 = por %p254, %p255
    %p257 = scmp.ne.s32.totalorder %s248, %s249
    %p258 = scmp.eq.s32.totalorder %s26, 0
    %p259 = por %p257, %p258
    %p260 = scmp.ne.s32.totalorder %s248, %s249
    %p261 = scmp.eq.s32.totalorder %s27, 3
    %p262 = por %p260, %p261
    %p264 = scmp.ne.s32.totalorder %s249, %s263
    %p265 = scmp.eq.s32.totalorder %s27, 0
    %p266 = por %p264, %p265
    %s268 = sadd.s32 %s267, 1
    %p271 = scmp.eq.s32.totalorder %s21, 3
    %p272 = scmp.ne.s32.totalorder %s267, %s269
    %p273 = scmp.eq.s32.totalorder %s21, 0
    %p274 = por %p272, %p273
    %p275 = scmp.ne.s32.totalorder %s267, %s269
    %p276 = scmp.eq.s32.totalorder %s26, 3
    %p277 = por %p275, %p276
    %p278 = scmp.ne.s32.totalorder %s269, %s270
    %p279 = scmp.eq.s32.totalorder %s26, 0
    %p280 = por %p278, %p279
    %p281 = scmp.ne.s32.totalorder %s269, %s270
    %p282 = scmp.eq.s32.totalorder %s27, 3
    %p283 = por %p281, %p282
    %p285 = scmp.ne.s32.totalorder %s270, %s284
    %p286 = scmp.eq.s32.totalorder %s27, 0
    %p287 = por %p285, %p286
    %s289 = sadd.s32 %s288, 1
    %p292 = scmp.eq.s32.totalorder %s21, 3
    %p293 = scmp.ne.s32.totalorder %s288, %s290
    %p294 = scmp.eq.s32.totalorder %s21, 0
    %p295 = por %p293, %p294
    %p296 = scmp.ne.s32.totalorder %s288, %s290
    %p297 = scmp.eq.s32.totalorder %s26, 3
    %p298 = por %p296, %p297
    %p299 = scmp.ne.s32.totalorder %s290, %s291
    %p300 = scmp.eq.s32.totalorder %s26, 0
    %p301 = por %p299, %p300
    %p302 = scmp.ne.s32.totalorder %s290, %s291
    %p303 = scmp.eq.s32.totalorder %s27, 3
    %p304 = por %p302, %p303
    %p306 = scmp.ne.s32.totalorder %s291, %s305
    %p307 = scmp.eq.s32.totalorder %s27, 0
    %p308 = por %p306, %p307
    %s310 = sadd.s32 %s309, 1
    %p313 = scmp.eq.s32.totalorder %s21, 3
    %p314 = scmp.ne.s32.totalorder %s309, %s311
    %p315 = scmp.eq.s32.totalorder %s21, 0
    %p316 = por %p314, %p315
    %p317 = scmp.ne.s32.totalorder %s309, %s311
    %p318 = scmp.eq.s32.totalorder %s26, 3
    %p319 = por %p317, %p318
    %p320 = scmp.ne.s32.totalorder %s311, %s312
    %p321 = scmp.eq.s32.totalorder %s26, 0
    %p322 = por %p320, %p321
    %p323 = scmp.ne.s32.totalorder %s311, %s312
    %p324 = scmp.eq.s32.totalorder %s27, 3
    %p325 = por %p323, %p324
    %p327 = scmp.ne.s32.totalorder %s312, %s326
    %p328 = scmp.eq.s32.totalorder %s27, 0
    %p329 = por %p327, %p328
    %s331 = sadd.s32 %s330, 1
    %p334 = scmp.eq.s32.totalorder %s21, 3
    %p335 = scmp.ne.s32.totalorder %s330, %s332
    %p336 = scmp.eq.s32.totalorder %s21, 0
    %p337 = por %p335, %p336
    %p338 = scmp.ne.s32.totalorder %s330, %s332
    %p339 = scmp.eq.s32.totalorder %s26, 3
    %p340 = por %p338, %p339
    %p341 = scmp.ne.s32.totalorder %s332, %s333
    %p342 = scmp.eq.s32.totalorder %s26, 0
    %p343 = por %p341, %p342
    %p344 = scmp.ne.s32.totalorder %s332, %s333
    %p345 = scmp.eq.s32.totalorder %s27, 3
    %p346 = por %p344, %p345
    %p348 = scmp.ne.s32.totalorder %s333, %s347
    %p349 = scmp.eq.s32.totalorder %s27, 0
    %p350 = por %p348, %p349
    %s352 = sadd.s32 %s351, 1
    %p355 = scmp.eq.s32.totalorder %s21, 3
    %p356 = scmp.ne.s32.totalorder %s351, %s353
    %p357 = scmp.eq.s32.totalorder %s21, 0
    %p358 = por %p356, %p357
    %p359 = scmp.ne.s32.totalorder %s351, %s353
    %p360 = scmp.eq.s32.totalorder %s26, 3
    %p361 = por %p359, %p360
    %p362 = scmp.ne.s32.totalorder %s353, %s354
    %p363 = scmp.eq.s32.totalorder %s26, 0
    %p364 = por %p362, %p363
    %p365 = scmp.ne.s32.totalorder %s353, %s354
    %p366 = scmp.eq.s32.totalorder %s27, 3
    %p367 = por %p365, %p366
    %p369 = scmp.ne.s32.totalorder %s354, %s368
    %p370 = scmp.eq.s32.totalorder %s27, 0
    %p371 = por %p369, %p370
    %s373 = sadd.s32 %s372, 1
    %p376 = scmp.eq.s32.totalorder %s21, 3
    %p377 = scmp.ne.s32.totalorder %s372, %s374
    %p378 = scmp.eq.s32.totalorder %s21, 0
    %p379 = por %p377, %p378
    %p380 = scmp.ne.s32.totalorder %s372, %s374
    %p381 = scmp.eq.s32.totalorder %s26, 3
    %p382 = por %p380, %p381
    %p383 = scmp.ne.s32.totalorder %s374, %s375
    %p384 = scmp.eq.s32.totalorder %s26, 0
    %p385 = por %p383, %p384
    %p386 = scmp.ne.s32.totalorder %s374, %s375
    %p387 = scmp.eq.s32.totalorder %s27, 3
    %p388 = por %p386, %p387
    %p390 = scmp.ne.s32.totalorder %s375, %s389
    %p391 = scmp.eq.s32.totalorder %s27, 0
    %p392 = por %p390, %p391
    %s393 = ssub.s32 %s28, %s40
    %s394 = ssub.s32 %s29, %s36
    %s395 = sor.u32 %s393, %s394
    %p396 = scmp.eq.s32.totalorder %s395, 0
    %s398 = sadd.s32 %s397, 1
    %s399 = scalar_select %p396, %s397, %s398
    %p402 = pneg %p396
    %p403 = scmp.eq.s32.totalorder %s21, 3
    %p404 = por %p402, %p403
    %p405 = scmp.ne.s32.totalorder %s397, %s400
    %p406 = scmp.eq.s32.totalorder %s21, 0
    %p407 = por %p405, %p406
    %p408 = scmp.ne.s32.totalorder %s397, %s400
    %p409 = scmp.eq.s32.totalorder %s26, 3
    %p410 = por %p408, %p409
    %p411 = scmp.ne.s32.totalorder %s400, %s401
    %p412 = scmp.eq.s32.totalorder %s26, 0
    %p413 = por %p411, %p412
    %p414 = scmp.ne.s32.totalorder %s400, %s401
    %p415 = scmp.eq.s32.totalorder %s27, 3
    %p416 = por %p414, %p415
    %p418 = scmp.ne.s32.totalorder %s401, %s417
    %p419 = scmp.eq.s32.totalorder %s27, 0
    %p420 = por %p418, %p419
    %p421 = scmp.le.s32.totalorder 1, %s21
    %p422 = scmp.lt.s32.totalorder %s21, 5
    %p423 = pnand %p421, %p422
    %p424 = pneg %p423
    // Predicated region
    $region9: #{our_fe_forward.1} parent=5 // pred_check
      _
    $region10: #{our_fe_forward.1} parent=5 // pred_check_branch
      %426 = sbr.rel (%p423) target = $region12
    $region11: #{our_fe_forward.1} parent=5 // pred_region
      %s427 = ssub.s32 %s21, 1
      // Predicated region
      $region13: #{our_fe_forward.1} parent=11 // pred_check
        %p428 = pneg %p154
      $region14: #{our_fe_forward.1} parent=11 // pred_check_branch
        %430 = sbr.rel (%p428) target = $region16
      $region15: #{our_fe_forward.1} parent=11 // pred_region
        _
      $region16: #{our_fe_forward.1} parent=11 // pred_fallthru
        _
      // Predicated region
      $region17: #{our_fe_forward.1} parent=11 // pred_check
        %p431 = pneg %p175
      $region18: #{our_fe_forward.1} parent=11 // pred_check_branch
        %433 = sbr.rel (%p431) target = $region20
      $region19: #{our_fe_forward.1} parent=11 // pred_region
        _
      $region20: #{our_fe_forward.1} parent=11 // pred_fallthru
        _
      // Predicated region
      $region21: #{our_fe_forward.1} parent=11 // pred_check
        %p434 = pneg %p196
      $region22: #{our_fe_forward.1} parent=11 // pred_check_branch
        %436 = sbr.rel (%p434) target = $region24
      $region23: #{our_fe_forward.1} parent=11 // pred_region
        _
      $region24: #{our_fe_forward.1} parent=11 // pred_fallthru
        _
      // Predicated region
      $region25: #{our_fe_forward.1} parent=11 // pred_check
        %p437 = pneg %p217
      $region26: #{our_fe_forward.1} parent=11 // pred_check_branch
        %439 = sbr.rel (%p437) target = $region28
      $region27: #{our_fe_forward.1} parent=11 // pred_region
        _
      $region28: #{our_fe_forward.1} parent=11 // pred_fallthru
        _
      // Predicated region
      $region29: #{our_fe_forward.1} parent=11 // pred_check
        %p440 = pneg %p238
      $region30: #{our_fe_forward.1} parent=11 // pred_check_branch
        %442 = sbr.rel (%p440) target = $region32
      $region31: #{our_fe_forward.1} parent=11 // pred_region
        _
      $region32: #{our_fe_forward.1} parent=11 // pred_fallthru
        _
      // Predicated region
      $region33: #{our_fe_forward.1} parent=11 // pred_check
        %p443 = pneg %p259
      $region34: #{our_fe_forward.1} parent=11 // pred_check_branch
        %445 = sbr.rel (%p443) target = $region36
      $region35: #{our_fe_forward.1} parent=11 // pred_region
        _
      $region36: #{our_fe_forward.1} parent=11 // pred_fallthru
        _
      // Predicated region
      $region37: #{our_fe_forward.1} parent=11 // pred_check
        %p446 = pneg %p280
      $region38: #{our_fe_forward.1} parent=11 // pred_check_branch
        %448 = sbr.rel (%p446) target = $region40
      $region39: #{our_fe_forward.1} parent=11 // pred_region
        _
      $region40: #{our_fe_forward.1} parent=11 // pred_fallthru
        _
      // Predicated region
      $region41: #{our_fe_forward.1} parent=11 // pred_check
        %p449 = pneg %p301
      $region42: #{our_fe_forward.1} parent=11 // pred_check_branch
        %451 = sbr.rel (%p449) target = $region44
      $region43: #{our_fe_forward.1} parent=11 // pred_region
        _
      $region44: #{our_fe_forward.1} parent=11 // pred_fallthru
        _
      // Predicated region
      $region45: #{our_fe_forward.1} parent=11 // pred_check
        %p452 = pneg %p322
      $region46: #{our_fe_forward.1} parent=11 // pred_check_branch
        %454 = sbr.rel (%p452) target = $region48
      $region47: #{our_fe_forward.1} parent=11 // pred_region
        _
      $region48: #{our_fe_forward.1} parent=11 // pred_fallthru
        _
      // Predicated region
      $region49: #{our_fe_forward.1} parent=11 // pred_check
        %p455 = pneg %p343
      $region50: #{our_fe_forward.1} parent=11 // pred_check_branch
        %457 = sbr.rel (%p455) target = $region52
      $region51: #{our_fe_forward.1} parent=11 // pred_region
        _
      $region52: #{our_fe_forward.1} parent=11 // pred_fallthru
        _
      // Predicated region
      $region53: #{our_fe_forward.1} parent=11 // pred_check
        %p458 = pneg %p364
      $region54: #{our_fe_forward.1} parent=11 // pred_check_branch
        %460 = sbr.rel (%p458) target = $region56
      $region55: #{our_fe_forward.1} parent=11 // pred_region
        _
      $region56: #{our_fe_forward.1} parent=11 // pred_fallthru
        _
      // Predicated region
      $region57: #{our_fe_forward.1} parent=11 // pred_check
        %p461 = pneg %p385
      $region58: #{our_fe_forward.1} parent=11 // pred_check_branch
        %463 = sbr.rel (%p461) target = $region60
      $region59: #{our_fe_forward.1} parent=11 // pred_region
        _
      $region60: #{our_fe_forward.1} parent=11 // pred_fallthru
        _
    $region12: #{our_fe_forward.1} parent=5 // pred_fallthru
      _
    %p464 = scmp.lt.s32.totalorder %s21, 4
    // Predicated region
    $region61: #{our_fe_forward.1} parent=5 // pred_check
      %p465 = pneg %p464
    $region62: #{our_fe_forward.1} parent=5 // pred_check_branch
      %467 = sbr.rel (%p465) target = $region64
    $region63: #{our_fe_forward.1} parent=5 // pred_region
      // Predicated region
      $region65: #{our_fe_forward.1} parent=63 // pred_check
        %p468 = pneg %p63
      $region66: #{our_fe_forward.1} parent=63 // pred_check_branch
        %470 = sbr.rel (%p468) target = $region68
      $region67: #{our_fe_forward.1} parent=63 // pred_region
        %s471 = smul.u32 %s29, 8
        %s472 = ssub.s32 %s471, 1
        %p473 = scmp.gt.s32.totalorder %s472, 0
        %s474 = scalar_select %p473, %s472, 0
        %s475 = smul.u32 2, %s474
        %p476 = scmp.lt.s32.totalorder %s28, 1
        %s477 = scalar_select %p476, %s28, 1
        %p478 = scmp.lt.s32.totalorder %s475, 31
        %s479 = scalar_select %p478, %s475, 31
        %s480 = smul.addr %s477, 32
        %s481 = sadd.s32 %s479, %s480
        %s482 = smul.addr %s481, 4
        %s483 = scalar_lea.vmem %s0, %s482
        %s484 = smul.u32 %s29, 8
        %s485 = ssub.s32 %s484, 1
        %p486 = scmp.gt.s32.totalorder %s485, 0
        %s487 = scalar_select %p486, %s485, 0
        %s488 = smul.u32 2, %s487
      $region68: #{our_fe_forward.1} parent=63 // pred_fallthru
        _
      // Predicated region
      $region69: #{our_fe_forward.1} parent=63 // pred_check
        %p489 = pneg %p91
      $region70: #{our_fe_forward.1} parent=63 // pred_check_branch
        %491 = sbr.rel (%p489) target = $region72
      $region71: #{our_fe_forward.1} parent=63 // pred_region
        %s492 = smul.u32 16, %s29
        %p493 = scmp.lt.s32.totalorder %s28, 1
        %s494 = scalar_select %p493, %s28, 1
        %p495 = scmp.lt.s32.totalorder %s492, 31
        %s496 = scalar_select %p495, %s492, 31
        %s497 = smul.addr %s494, 32
        %s498 = sadd.s32 %s496, %s497
        %s499 = smul.addr %s498, 4
        %s500 = scalar_lea.vmem %s1, %s499
        %s501 = smul.u32 16, %s29
      $region72: #{our_fe_forward.1} parent=63 // pred_fallthru
        _
      // Predicated region
      $region73: #{our_fe_forward.1} parent=63 // pred_check
        %p502 = pneg %p127
      $region74: #{our_fe_forward.1} parent=63 // pred_check_branch
        %504 = sbr.rel (%p502) target = $region76
      $region75: #{our_fe_forward.1} parent=63 // pred_region
        %s505 = sadd.s32 %s29, 1
        %s506 = smul.u32 %s505, 8
        %p507 = scmp.lt.s32.totalorder %s506, 15
        %s508 = scalar_select %p507, %s506, 15
        %s509 = smul.u32 2, %s508
        %p510 = scmp.lt.s32.totalorder %s28, 1
        %s511 = scalar_select %p510, %s28, 1
        %p512 = scmp.lt.s32.totalorder %s509, 31
        %s513 = scalar_select %p512, %s509, 31
        %s514 = smul.addr %s511, 32
        %s515 = sadd.s32 %s513, %s514
        %s516 = smul.addr %s515, 4
        %s517 = scalar_lea.vmem %s2, %s516
        %s518 = sadd.s32 %s29, 1
        %s519 = smul.u32 %s518, 8
        %p520 = scmp.lt.s32.totalorder %s519, 15
        %s521 = scalar_select %p520, %s519, 15
        %s522 = smul.u32 2, %s521
      $region76: #{our_fe_forward.1} parent=63 // pred_fallthru
        _
    $region64: #{our_fe_forward.1} parent=5 // pred_fallthru
      _
    %p523 = scmp.le.s32.totalorder 1, %s21
    %p524 = scmp.lt.s32.totalorder %s21, 5
    %p525 = pnand %p523, %p524
    %p526 = pneg %p525
    // Predicated region
    $region77: #{our_fe_forward.1} parent=5 // pred_check
      _
    $region78: #{our_fe_forward.1} parent=5 // pred_check_branch
      %528 = sbr.rel (%p525) target = $region80
    $region79: #{our_fe_forward.1} parent=5 // pred_region
      %s529 = ssub.s32 %s21, 1
      %s530 = smul.u32 %s31, 8
      %s531 = ssub.s32 %s530, 1
      %p532 = scmp.gt.s32.totalorder %s531, 0
      %s533 = scalar_select %p532, %s531, 0
      %s534 = smul.u32 2, %s533
      %p535 = scmp.lt.s32.totalorder %s30, 1
      %s536 = scalar_select %p535, %s30, 1
      %p537 = scmp.lt.s32.totalorder %s534, 31
      %s538 = scalar_select %p537, %s534, 31
      %s539 = smul.addr %s536, 32
      %s540 = sadd.s32 %s538, %s539
      %s541 = smul.addr %s540, 4
      %s542 = scalar_lea.vmem %s0, %s541
      %p543 = pneg %p69
      %p544 = pneg %p66
      %s545 = smul.u32 16, %s31
      %p546 = scmp.lt.s32.totalorder %s30, 1
      %s547 = scalar_select %p546, %s30, 1
      %p548 = scmp.lt.s32.totalorder %s545, 31
      %s549 = scalar_select %p548, %s545, 31
      %s550 = smul.addr %s547, 32
      %s551 = sadd.s32 %s549, %s550
      %s552 = smul.addr %s551, 4
      %s553 = scalar_lea.vmem %s1, %s552
      %p554 = pneg %p97
      %p555 = pneg %p94
      %s556 = sadd.s32 %s31, 1
      %s557 = smul.u32 %s556, 8
      %p558 = scmp.lt.s32.totalorder %s557, 15
      %s559 = scalar_select %p558, %s557, 15
      %s560 = smul.u32 2, %s559
      %p561 = scmp.lt.s32.totalorder %s30, 1
      %s562 = scalar_select %p561, %s30, 1
      %p563 = scmp.lt.s32.totalorder %s560, 31
      %s564 = scalar_select %p563, %s560, 31
      %s565 = smul.addr %s562, 32
      %s566 = sadd.s32 %s564, %s565
      %s567 = smul.addr %s566, 4
      %s568 = scalar_lea.vmem %s2, %s567
      %p569 = pneg %p133
      %p570 = pneg %p130
      %p571 = pneg %p154
      %p572 = pneg %p151
      %p573 = pneg %p175
      %p574 = pneg %p172
      %p575 = pneg %p196
      %p576 = pneg %p193
      %p577 = pneg %p217
      %p578 = pneg %p214
      %p579 = pneg %p238
      %p580 = pneg %p235
      %p581 = pneg %p259
      %p582 = pneg %p256
      %p583 = pneg %p280
      %p584 = pneg %p277
      %p585 = pneg %p301
      %p586 = pneg %p298
      %p587 = pneg %p322
      %p588 = pneg %p319
      %p589 = pneg %p343
      %p590 = pneg %p340
      %p591 = pneg %p364
      %p592 = pneg %p361
      %p593 = pneg %p385
      %p594 = pneg %p382
      %p595 = pneg %p413
      %p596 = pneg %p410
      %s597 = smul.u32 16, %s31
      %p598 = scmp.lt.s32.totalorder %s30, 1
      %s599 = scalar_select %p598, %s30, 1
      %p600 = scmp.lt.s32.totalorder %s597, 31
      %s601 = scalar_select %p600, %s597, 31
      %s602 = smul.addr %s599, 32
      %s603 = sadd.s32 %s601, %s602
      %s604 = smul.addr %s603, 8
      %s605 = scalar_lea.vmem %s15, %s604
      %s606 = smul.u32 %s31, 8
      %s607 = ssub.s32 %s606, 1
      %p608 = scmp.gt.s32.totalorder %s607, 0
      %s609 = scalar_select %p608, %s607, 0
      %s610 = smul.u32 2, %s609
      %p611 = scmp.lt.s32.totalorder %s30, 1
      %s612 = scalar_select %p611, %s30, 1
      %p613 = scmp.lt.s32.totalorder %s610, 31
      %s614 = scalar_select %p613, %s610, 31
      %s615 = smul.addr %s612, 32
      %s616 = sadd.s32 %s614, %s615
      %s617 = smul.addr %s616, 4
      %s618 = scalar_lea.vmem %s0, %s617
      %s619 = smul.u32 %s31, 8
      %s620 = ssub.s32 %s619, 1
      %p621 = scmp.gt.s32.totalorder %s620, 0
      %s622 = scalar_select %p621, %s620, 0
      %s623 = smul.u32 2, %s622
      %s624 = smul.u32 16, %s31
      %p625 = scmp.lt.s32.totalorder %s30, 1
      %s626 = scalar_select %p625, %s30, 1
      %p627 = scmp.lt.s32.totalorder %s624, 31
      %s628 = scalar_select %p627, %s624, 31
      %s629 = smul.addr %s626, 32
      %s630 = sadd.s32 %s628, %s629
      %s631 = smul.addr %s630, 4
      %s632 = scalar_lea.vmem %s1, %s631
      %s633 = smul.u32 16, %s31
      %s634 = sadd.s32 %s31, 1
      %s635 = smul.u32 %s634, 8
      %p636 = scmp.lt.s32.totalorder %s635, 15
      %s637 = scalar_select %p636, %s635, 15
      %s638 = smul.u32 2, %s637
      %p639 = scmp.lt.s32.totalorder %s30, 1
      %s640 = scalar_select %p639, %s30, 1
      %p641 = scmp.lt.s32.totalorder %s638, 31
      %s642 = scalar_select %p641, %s638, 31
      %s643 = smul.addr %s640, 32
      %s644 = sadd.s32 %s642, %s643
      %s645 = smul.addr %s644, 4
      %s646 = scalar_lea.vmem %s2, %s645
      %s647 = sadd.s32 %s31, 1
      %s648 = smul.u32 %s647, 8
      %p649 = scmp.lt.s32.totalorder %s648, 15
      %s650 = scalar_select %p649, %s648, 15
      %s651 = smul.u32 2, %s650
      %s652 = smul.u32 16, %s31
      %p653 = scmp.lt.s32.totalorder %s30, 1
      %s654 = scalar_select %p653, %s30, 1
      %p655 = scmp.lt.s32.totalorder %s652, 31
      %s656 = scalar_select %p655, %s652, 31
      %s657 = smul.addr %s654, 32
      %s658 = sadd.s32 %s656, %s657
      %s659 = smul.addr %s658, 8
      %s660 = scalar_lea.vmem %s15, %s659
      %s661 = smul.u32 16, %s31
      %v663 = vld [vmem:[%s618] sm:$0xf]
      %v664 = vld [vmem:[%s618 + $0x4] sm:$0xf]
      %v665 = vld [vmem:[%s632] sm:$0xf]
      %v666 = vld [vmem:[%s632 + $0x4] sm:$0xf]
      %v667 = vld [vmem:[%s632 + $0x8] sm:$0xf]
      %v668 = vld [vmem:[%s632 + $0xc] sm:$0xf]
      %v669 = vld [vmem:[%s632 + $0x10] sm:$0xf]
      %v670 = vld [vmem:[%s632 + $0x14] sm:$0xf]
      %v671 = vld [vmem:[%s632 + $0x18] sm:$0xf]
      %v672 = vld [vmem:[%s632 + $0x1c] sm:$0xf]
      %v673 = vld [vmem:[%s632 + $0x20] sm:$0xf]
      %v674 = vld [vmem:[%s632 + $0x24] sm:$0xf]
      %v675 = vld [vmem:[%s632 + $0x28] sm:$0xf]
      %v676 = vld [vmem:[%s632 + $0x2c] sm:$0xf]
      %v677 = vld [vmem:[%s632 + $0x30] sm:$0xf]
      %v678 = vld [vmem:[%s632 + $0x34] sm:$0xf]
      %v679 = vld [vmem:[%s632 + $0x38] sm:$0xf]
      %v680 = vld [vmem:[%s632 + $0x3c] sm:$0xf]
      %v681 = vld [vmem:[%s646] sm:$0xf]
      %v682 = vld [vmem:[%s646 + $0x4] sm:$0xf]
      %v685 = vunpack.c.l.b16 %v663
      %v686 = vunpack.c.l.b16 %v664
      %v687 = vpack.c.b16 %v686, %v685
      %v704 = vunpack.c.l.b16 %v665
      %v705 = vunpack.c.l.b16 %v666
      %v706 = vunpack.c.l.b16 %v667
      %v707 = vunpack.c.l.b16 %v668
      %v708 = vunpack.c.l.b16 %v669
      %v709 = vunpack.c.l.b16 %v670
      %v710 = vunpack.c.l.b16 %v671
      %v711 = vunpack.c.l.b16 %v672
      %v712 = vunpack.c.l.b16 %v673
      %v713 = vunpack.c.l.b16 %v674
      %v714 = vunpack.c.l.b16 %v675
      %v715 = vunpack.c.l.b16 %v676
      %v716 = vunpack.c.l.b16 %v677
      %v717 = vunpack.c.l.b16 %v678
      %v718 = vunpack.c.l.b16 %v679
      %v719 = vunpack.c.l.b16 %v680
      %v720 = vpack.c.b16 %v705, %v704
      %v721 = vpack.c.b16 %v707, %v706
      %v722 = vpack.c.b16 %v709, %v708
      %v723 = vpack.c.b16 %v711, %v710
      %v724 = vpack.c.b16 %v713, %v712
      %v725 = vpack.c.b16 %v715, %v714
      %v726 = vpack.c.b16 %v717, %v716
      %v727 = vpack.c.b16 %v719, %v718
      %v730 = vunpack.c.l.b16 %v681
      %v731 = vunpack.c.l.b16 %v682
      %v732 = vpack.c.b16 %v731, %v730
      %v733 = vld [vmem:[%s3] sm:$0x3]
      %vm734 = vcmask 31744
      %v736 = vsel %vm734, %v687, 0
      %v739 = vsel %vm734, %v720, 0
      %v742 = vsel %vm734, %v721, 0
      %v745 = vsel %vm734, %v722, 0
      %v748 = vsel %vm734, %v723, 0
      %v751 = vsel %vm734, %v724, 0
      %v754 = vsel %vm734, %v725, 0
      %v757 = vsel %vm734, %v726, 0
      %v760 = vsel %vm734, %v727, 0
      %v763 = vsel %vm734, %v732, 0
      %vm765 = vcmask 1041408
      %v767 = vsel %vm765, %v733, 0
      %769 = vmatpush.bf16.msra.mxu0 0
      %770 = vmatpush.bf16.msra.mxu0 0
      %771 = vmatpush.bf16.msra.mxu0 0
      %772 = vmatpush.bf16.msra.mxu0 0
      %773 = vmatpush.bf16.msra.mxu0 0
      %774 = vmatpush.bf16.msra.mxu0 0
      %775 = vmatpush.bf16.msra.mxu0 0
      %776 = vmatpush.bf16.msra.mxu0 %v767
      %777 = vmatmul.bf16.gmra.mxu0 %v736
      %v778 = vpop.f32.mrf.mxu0
      %v779 = vadd.f32 0.0, %v778
      %v780 = vpop.f32.mrf.mxu0
      %v781 = vadd.f32 0.0, %v780
      %782 = vmatmul.bf16.gmra.mxu0 %v739
      %v783 = vpop.f32.mrf.mxu0
      %v784 = vadd.f32 0.0, %v783
      %v785 = vpop.f32.mrf.mxu0
      %v786 = vadd.f32 0.0, %v785
      %787 = vmatmul.bf16.gmra.mxu0 %v742
      %v788 = vpop.f32.mrf.mxu0
      %v789 = vadd.f32 0.0, %v788
      %v790 = vpop.f32.mrf.mxu0
      %v791 = vadd.f32 0.0, %v790
      %792 = vmatmul.bf16.gmra.mxu0 %v745
      %v793 = vpop.f32.mrf.mxu0
      %v794 = vadd.f32 0.0, %v793
      %v795 = vpop.f32.mrf.mxu0
      %v796 = vadd.f32 0.0, %v795
      %797 = vmatmul.bf16.gmra.mxu0 %v748
      %v798 = vpop.f32.mrf.mxu0
      %v799 = vadd.f32 0.0, %v798
      %v800 = vpop.f32.mrf.mxu0
      %v801 = vadd.f32 0.0, %v800
      %802 = vmatmul.bf16.gmra.mxu0 %v751
      %v803 = vpop.f32.mrf.mxu0
      %v804 = vadd.f32 0.0, %v803
      %v805 = vpop.f32.mrf.mxu0
      %v806 = vadd.f32 0.0, %v805
      %807 = vmatmul.bf16.gmra.mxu0 %v754
      %v808 = vpop.f32.mrf.mxu0
      %v809 = vadd.f32 0.0, %v808
      %v810 = vpop.f32.mrf.mxu0
      %v811 = vadd.f32 0.0, %v810
      %812 = vmatmul.bf16.gmra.mxu0 %v757
      %v813 = vpop.f32.mrf.mxu0
      %v814 = vadd.f32 0.0, %v813
      %v815 = vpop.f32.mrf.mxu0
      %v816 = vadd.f32 0.0, %v815
      %817 = vmatmul.bf16.gmra.mxu0 %v760
      %v818 = vpop.f32.mrf.mxu0
      %v819 = vadd.f32 0.0, %v818
      %v820 = vpop.f32.mrf.mxu0
      %v821 = vadd.f32 0.0, %v820
      %822 = vmatmul.bf16.gmra.mxu0 %v763
      %v823 = vpop.f32.mrf.mxu0
      %v824 = vadd.f32 0.0, %v823
      %v825 = vpop.f32.mrf.mxu0
      %v826 = vadd.f32 0.0, %v825
      %827 = vdwg.mxu0
      %v828 = vld [vmem:[%s4] sm:$0x1]
      %v830 = vperm.slane %v828, 0
      %v832 = vmul.f32 %v779, %v830
      %v833 = vmul.f32 %v781, %v830
      %v834 = vmul.f32 %v784, %v830
      %v835 = vmul.f32 %v786, %v830
      %v836 = vmul.f32 %v789, %v830
      %v837 = vmul.f32 %v791, %v830
      %v838 = vmul.f32 %v794, %v830
      %v839 = vmul.f32 %v796, %v830
      %v840 = vmul.f32 %v799, %v830
      %v841 = vmul.f32 %v801, %v830
      %v842 = vmul.f32 %v804, %v830
      %v843 = vmul.f32 %v806, %v830
      %v844 = vmul.f32 %v809, %v830
      %v845 = vmul.f32 %v811, %v830
      %v846 = vmul.f32 %v814, %v830
      %v847 = vmul.f32 %v816, %v830
      %v848 = vmul.f32 %v819, %v830
      %v849 = vmul.f32 %v821, %v830
      %v850 = vmul.f32 %v824, %v830
      %v851 = vmul.f32 %v826, %v830
      %v852 = vld [vmem:[%s5] sm:$0x1]
      %v854 = vperm.slane %v852, 0
      %v856 = vadd.f32 %v832, %v854
      %v857 = vadd.f32 %v833, %v854
      %v858 = vadd.f32 %v834, %v854
      %v859 = vadd.f32 %v835, %v854
      %v860 = vadd.f32 %v836, %v854
      %v861 = vadd.f32 %v837, %v854
      %v862 = vadd.f32 %v838, %v854
      %v863 = vadd.f32 %v839, %v854
      %v864 = vadd.f32 %v840, %v854
      %v865 = vadd.f32 %v841, %v854
      %v866 = vadd.f32 %v842, %v854
      %v867 = vadd.f32 %v843, %v854
      %v868 = vadd.f32 %v844, %v854
      %v869 = vadd.f32 %v845, %v854
      %v870 = vadd.f32 %v846, %v854
      %v871 = vadd.f32 %v847, %v854
      %v872 = vadd.f32 %v848, %v854
      %v873 = vadd.f32 %v849, %v854
      %v874 = vadd.f32 %v850, %v854
      %v875 = vadd.f32 %v851, %v854
      %v876 = vmax.f32 %v856, 0.0
      %v877 = vmax.f32 %v857, 0.0
      %v878 = vmax.f32 %v858, 0.0
      %v879 = vmax.f32 %v859, 0.0
      %v880 = vmax.f32 %v860, 0.0
      %v881 = vmax.f32 %v861, 0.0
      %v882 = vmax.f32 %v862, 0.0
      %v883 = vmax.f32 %v863, 0.0
      %v884 = vmax.f32 %v864, 0.0
      %v885 = vmax.f32 %v865, 0.0
      %v886 = vmax.f32 %v866, 0.0
      %v887 = vmax.f32 %v867, 0.0
      %v888 = vmax.f32 %v868, 0.0
      %v889 = vmax.f32 %v869, 0.0
      %v890 = vmax.f32 %v870, 0.0
      %v891 = vmax.f32 %v871, 0.0
      %v892 = vmax.f32 %v872, 0.0
      %v893 = vmax.f32 %v873, 0.0
      %v894 = vmax.f32 %v874, 0.0
      %v895 = vmax.f32 %v875, 0.0
      %v896 = vpack.c.bf16 %v877, %v876
      %v897 = vpack.c.bf16 %v879, %v878
      %v898 = vpack.c.bf16 %v881, %v880
      %v899 = vpack.c.bf16 %v883, %v882
      %v900 = vpack.c.bf16 %v885, %v884
      %v901 = vpack.c.bf16 %v887, %v886
      %v902 = vpack.c.bf16 %v889, %v888
      %v903 = vpack.c.bf16 %v891, %v890
      %v904 = vpack.c.bf16 %v893, %v892
      %v905 = vpack.c.bf16 %v895, %v894
      %v906 = vld [vmem:[%s6] sm:$0x3]
      %v908 = vsel %vm734, %v896, 0
      %v911 = vsel %vm734, %v897, 0
      %v914 = vsel %vm734, %v898, 0
      %v917 = vsel %vm734, %v899, 0
      %v920 = vsel %vm734, %v900, 0
      %v923 = vsel %vm734, %v901, 0
      %v926 = vsel %vm734, %v902, 0
      %v929 = vsel %vm734, %v903, 0
      %v932 = vsel %vm734, %v904, 0
      %v935 = vsel %vm734, %v905, 0
      %v938 = vsel %vm765, %v906, 0
      %940 = vmatpush.bf16.msra.mxu0 0
      %941 = vmatpush.bf16.msra.mxu0 0
      %942 = vmatpush.bf16.msra.mxu0 0
      %943 = vmatpush.bf16.msra.mxu0 0
      %944 = vmatpush.bf16.msra.mxu0 0
      %945 = vmatpush.bf16.msra.mxu0 0
      %946 = vmatpush.bf16.msra.mxu0 0
      %947 = vmatpush.bf16.msra.mxu0 %v938
      %948 = vmatmul.bf16.gmra.mxu0 %v908
      %v949 = vpop.f32.mrf.mxu0
      %v950 = vadd.f32 0.0, %v949
      %v951 = vpop.f32.mrf.mxu0
      %v952 = vadd.f32 0.0, %v951
      %953 = vmatmul.bf16.gmra.mxu0 %v911
      %v954 = vpop.f32.mrf.mxu0
      %v955 = vadd.f32 0.0, %v954
      %v956 = vpop.f32.mrf.mxu0
      %v957 = vadd.f32 0.0, %v956
      %958 = vmatmul.bf16.gmra.mxu0 %v914
      %v959 = vpop.f32.mrf.mxu0
      %v960 = vadd.f32 0.0, %v959
      %v961 = vpop.f32.mrf.mxu0
      %v962 = vadd.f32 0.0, %v961
      %963 = vmatmul.bf16.gmra.mxu0 %v917
      %v964 = vpop.f32.mrf.mxu0
      %v965 = vadd.f32 0.0, %v964
      %v966 = vpop.f32.mrf.mxu0
      %v967 = vadd.f32 0.0, %v966
      %968 = vmatmul.bf16.gmra.mxu0 %v920
      %v969 = vpop.f32.mrf.mxu0
      %v970 = vadd.f32 0.0, %v969
      %v971 = vpop.f32.mrf.mxu0
      %v972 = vadd.f32 0.0, %v971
      %973 = vmatmul.bf16.gmra.mxu0 %v923
      %v974 = vpop.f32.mrf.mxu0
      %v975 = vadd.f32 0.0, %v974
      %v976 = vpop.f32.mrf.mxu0
      %v977 = vadd.f32 0.0, %v976
      %978 = vmatmul.bf16.gmra.mxu0 %v926
      %v979 = vpop.f32.mrf.mxu0
      %v980 = vadd.f32 0.0, %v979
      %v981 = vpop.f32.mrf.mxu0
      %v982 = vadd.f32 0.0, %v981
      %983 = vmatmul.bf16.gmra.mxu0 %v929
      %v984 = vpop.f32.mrf.mxu0
      %v985 = vadd.f32 0.0, %v984
      %v986 = vpop.f32.mrf.mxu0
      %v987 = vadd.f32 0.0, %v986
      %988 = vmatmul.bf16.gmra.mxu0 %v932
      %v989 = vpop.f32.mrf.mxu0
      %v990 = vadd.f32 0.0, %v989
      %v991 = vpop.f32.mrf.mxu0
      %v992 = vadd.f32 0.0, %v991
      %993 = vmatmul.bf16.gmra.mxu0 %v935
      %v994 = vpop.f32.mrf.mxu0
      %v995 = vadd.f32 0.0, %v994
      %v996 = vpop.f32.mrf.mxu0
      %v997 = vadd.f32 0.0, %v996
      %998 = vdwg.mxu0
      %v999 = vld [vmem:[%s7] sm:$0x1]
      %v1001 = vperm.slane %v999, 0
      %v1003 = vmul.f32 %v950, %v1001
      %v1004 = vmul.f32 %v952, %v1001
      %v1005 = vmul.f32 %v955, %v1001
      %v1006 = vmul.f32 %v957, %v1001
      %v1007 = vmul.f32 %v960, %v1001
      %v1008 = vmul.f32 %v962, %v1001
      %v1009 = vmul.f32 %v965, %v1001
      %v1010 = vmul.f32 %v967, %v1001
      %v1011 = vmul.f32 %v970, %v1001
      %v1012 = vmul.f32 %v972, %v1001
      %v1013 = vmul.f32 %v975, %v1001
      %v1014 = vmul.f32 %v977, %v1001
      %v1015 = vmul.f32 %v980, %v1001
      %v1016 = vmul.f32 %v982, %v1001
      %v1017 = vmul.f32 %v985, %v1001
      %v1018 = vmul.f32 %v987, %v1001
      %v1019 = vmul.f32 %v990, %v1001
      %v1020 = vmul.f32 %v992, %v1001
      %v1021 = vmul.f32 %v995, %v1001
      %v1022 = vmul.f32 %v997, %v1001
      %v1023 = vld [vmem:[%s8] sm:$0x1]
      %v1025 = vperm.slane %v1023, 0
      %v1027 = vadd.f32 %v1003, %v1025
      %v1028 = vadd.f32 %v1004, %v1025
      %v1029 = vadd.f32 %v1005, %v1025
      %v1030 = vadd.f32 %v1006, %v1025
      %v1031 = vadd.f32 %v1007, %v1025
      %v1032 = vadd.f32 %v1008, %v1025
      %v1033 = vadd.f32 %v1009, %v1025
      %v1034 = vadd.f32 %v1010, %v1025
      %v1035 = vadd.f32 %v1011, %v1025
      %v1036 = vadd.f32 %v1012, %v1025
      %v1037 = vadd.f32 %v1013, %v1025
      %v1038 = vadd.f32 %v1014, %v1025
      %v1039 = vadd.f32 %v1015, %v1025
      %v1040 = vadd.f32 %v1016, %v1025
      %v1041 = vadd.f32 %v1017, %v1025
      %v1042 = vadd.f32 %v1018, %v1025
      %v1043 = vadd.f32 %v1019, %v1025
      %v1044 = vadd.f32 %v1020, %v1025
      %v1045 = vadd.f32 %v1021, %v1025
      %v1046 = vadd.f32 %v1022, %v1025
      %v1047 = vmax.f32 %v1027, 0.0
      %v1048 = vmax.f32 %v1028, 0.0
      %v1049 = vmax.f32 %v1029, 0.0
      %v1050 = vmax.f32 %v1030, 0.0
      %v1051 = vmax.f32 %v1031, 0.0
      %v1052 = vmax.f32 %v1032, 0.0
      %v1053 = vmax.f32 %v1033, 0.0
      %v1054 = vmax.f32 %v1034, 0.0
      %v1055 = vmax.f32 %v1035, 0.0
      %v1056 = vmax.f32 %v1036, 0.0
      %v1057 = vmax.f32 %v1037, 0.0
      %v1058 = vmax.f32 %v1038, 0.0
      %v1059 = vmax.f32 %v1039, 0.0
      %v1060 = vmax.f32 %v1040, 0.0
      %v1061 = vmax.f32 %v1041, 0.0
      %v1062 = vmax.f32 %v1042, 0.0
      %v1063 = vmax.f32 %v1043, 0.0
      %v1064 = vmax.f32 %v1044, 0.0
      %v1065 = vmax.f32 %v1045, 0.0
      %v1066 = vmax.f32 %v1046, 0.0
      %v1067 = vpack.c.bf16 %v1048, %v1047
      %v1068 = vpack.c.bf16 %v1050, %v1049
      %v1069 = vpack.c.bf16 %v1052, %v1051
      %v1070 = vpack.c.bf16 %v1054, %v1053
      %v1071 = vpack.c.bf16 %v1056, %v1055
      %v1072 = vpack.c.bf16 %v1058, %v1057
      %v1073 = vpack.c.bf16 %v1060, %v1059
      %v1074 = vpack.c.bf16 %v1062, %v1061
      %v1075 = vpack.c.bf16 %v1064, %v1063
      %v1076 = vpack.c.bf16 %v1066, %v1065
      %v1077 = vld [vmem:[%s9] sm:$0x3]
      %v1079 = vsel %vm734, %v1067, 0
      %v1082 = vsel %vm734, %v1068, 0
      %v1085 = vsel %vm734, %v1069, 0
      %v1088 = vsel %vm734, %v1070, 0
      %v1091 = vsel %vm734, %v1071, 0
      %v1094 = vsel %vm734, %v1072, 0
      %v1097 = vsel %vm734, %v1073, 0
      %v1100 = vsel %vm734, %v1074, 0
      %v1103 = vsel %vm734, %v1075, 0
      %v1106 = vsel %vm734, %v1076, 0
      %v1109 = vsel %vm765, %v1077, 0
      %1111 = vmatpush.bf16.msra.mxu0 0
      %1112 = vmatpush.bf16.msra.mxu0 0
      %1113 = vmatpush.bf16.msra.mxu0 0
      %1114 = vmatpush.bf16.msra.mxu0 0
      %1115 = vmatpush.bf16.msra.mxu0 0
      %1116 = vmatpush.bf16.msra.mxu0 0
      %1117 = vmatpush.bf16.msra.mxu0 0
      %1118 = vmatpush.bf16.msra.mxu0 %v1109
      %1119 = vmatmul.bf16.gmra.mxu0 %v1079
      %v1120 = vpop.f32.mrf.mxu0
      %v1121 = vadd.f32 0.0, %v1120
      %v1122 = vpop.f32.mrf.mxu0
      %v1123 = vadd.f32 0.0, %v1122
      %1124 = vmatmul.bf16.gmra.mxu0 %v1082
      %v1125 = vpop.f32.mrf.mxu0
      %v1126 = vadd.f32 0.0, %v1125
      %v1127 = vpop.f32.mrf.mxu0
      %v1128 = vadd.f32 0.0, %v1127
      %1129 = vmatmul.bf16.gmra.mxu0 %v1085
      %v1130 = vpop.f32.mrf.mxu0
      %v1131 = vadd.f32 0.0, %v1130
      %v1132 = vpop.f32.mrf.mxu0
      %v1133 = vadd.f32 0.0, %v1132
      %1134 = vmatmul.bf16.gmra.mxu0 %v1088
      %v1135 = vpop.f32.mrf.mxu0
      %v1136 = vadd.f32 0.0, %v1135
      %v1137 = vpop.f32.mrf.mxu0
      %v1138 = vadd.f32 0.0, %v1137
      %1139 = vmatmul.bf16.gmra.mxu0 %v1091
      %v1140 = vpop.f32.mrf.mxu0
      %v1141 = vadd.f32 0.0, %v1140
      %v1142 = vpop.f32.mrf.mxu0
      %v1143 = vadd.f32 0.0, %v1142
      %1144 = vmatmul.bf16.gmra.mxu0 %v1094
      %v1145 = vpop.f32.mrf.mxu0
      %v1146 = vadd.f32 0.0, %v1145
      %v1147 = vpop.f32.mrf.mxu0
      %v1148 = vadd.f32 0.0, %v1147
      %1149 = vmatmul.bf16.gmra.mxu0 %v1097
      %v1150 = vpop.f32.mrf.mxu0
      %v1151 = vadd.f32 0.0, %v1150
      %v1152 = vpop.f32.mrf.mxu0
      %v1153 = vadd.f32 0.0, %v1152
      %1154 = vmatmul.bf16.gmra.mxu0 %v1100
      %v1155 = vpop.f32.mrf.mxu0
      %v1156 = vadd.f32 0.0, %v1155
      %v1157 = vpop.f32.mrf.mxu0
      %v1158 = vadd.f32 0.0, %v1157
      %1159 = vmatmul.bf16.gmra.mxu0 %v1103
      %v1160 = vpop.f32.mrf.mxu0
      %v1161 = vadd.f32 0.0, %v1160
      %v1162 = vpop.f32.mrf.mxu0
      %v1163 = vadd.f32 0.0, %v1162
      %1164 = vmatmul.bf16.gmra.mxu0 %v1106
      %v1165 = vpop.f32.mrf.mxu0
      %v1166 = vadd.f32 0.0, %v1165
      %v1167 = vpop.f32.mrf.mxu0
      %v1168 = vadd.f32 0.0, %v1167
      %1169 = vdwg.mxu0
      %v1170 = vld [vmem:[%s10] sm:$0x1]
      %v1172 = vperm.slane %v1170, 0
      %v1174 = vmul.f32 %v1121, %v1172
      %v1175 = vmul.f32 %v1123, %v1172
      %v1176 = vmul.f32 %v1126, %v1172
      %v1177 = vmul.f32 %v1128, %v1172
      %v1178 = vmul.f32 %v1131, %v1172
      %v1179 = vmul.f32 %v1133, %v1172
      %v1180 = vmul.f32 %v1136, %v1172
      %v1181 = vmul.f32 %v1138, %v1172
      %v1182 = vmul.f32 %v1141, %v1172
      %v1183 = vmul.f32 %v1143, %v1172
      %v1184 = vmul.f32 %v1146, %v1172
      %v1185 = vmul.f32 %v1148, %v1172
      %v1186 = vmul.f32 %v1151, %v1172
      %v1187 = vmul.f32 %v1153, %v1172
      %v1188 = vmul.f32 %v1156, %v1172
      %v1189 = vmul.f32 %v1158, %v1172
      %v1190 = vmul.f32 %v1161, %v1172
      %v1191 = vmul.f32 %v1163, %v1172
      %v1192 = vmul.f32 %v1166, %v1172
      %v1193 = vmul.f32 %v1168, %v1172
      %v1194 = vld [vmem:[%s11] sm:$0x1]
      %v1196 = vperm.slane %v1194, 0
      %v1198 = vadd.f32 %v1174, %v1196
      %v1199 = vadd.f32 %v1175, %v1196
      %v1200 = vadd.f32 %v1176, %v1196
      %v1201 = vadd.f32 %v1177, %v1196
      %v1202 = vadd.f32 %v1178, %v1196
      %v1203 = vadd.f32 %v1179, %v1196
      %v1204 = vadd.f32 %v1180, %v1196
      %v1205 = vadd.f32 %v1181, %v1196
      %v1206 = vadd.f32 %v1182, %v1196
      %v1207 = vadd.f32 %v1183, %v1196
      %v1208 = vadd.f32 %v1184, %v1196
      %v1209 = vadd.f32 %v1185, %v1196
      %v1210 = vadd.f32 %v1186, %v1196
      %v1211 = vadd.f32 %v1187, %v1196
      %v1212 = vadd.f32 %v1188, %v1196
      %v1213 = vadd.f32 %v1189, %v1196
      %v1214 = vadd.f32 %v1190, %v1196
      %v1215 = vadd.f32 %v1191, %v1196
      %v1216 = vadd.f32 %v1192, %v1196
      %v1217 = vadd.f32 %v1193, %v1196
      %v1218 = vmax.f32 %v1198, 0.0
      %v1219 = vmax.f32 %v1199, 0.0
      %v1220 = vmax.f32 %v1200, 0.0
      %v1221 = vmax.f32 %v1201, 0.0
      %v1222 = vmax.f32 %v1202, 0.0
      %v1223 = vmax.f32 %v1203, 0.0
      %v1224 = vmax.f32 %v1204, 0.0
      %v1225 = vmax.f32 %v1205, 0.0
      %v1226 = vmax.f32 %v1206, 0.0
      %v1227 = vmax.f32 %v1207, 0.0
      %v1228 = vmax.f32 %v1208, 0.0
      %v1229 = vmax.f32 %v1209, 0.0
      %v1230 = vmax.f32 %v1210, 0.0
      %v1231 = vmax.f32 %v1211, 0.0
      %v1232 = vmax.f32 %v1212, 0.0
      %v1233 = vmax.f32 %v1213, 0.0
      %v1234 = vmax.f32 %v1214, 0.0
      %v1235 = vmax.f32 %v1215, 0.0
      %v1236 = vmax.f32 %v1216, 0.0
      %v1237 = vmax.f32 %v1217, 0.0
      %1258 = vrot.lane.b32.xlu0 %v1047, 4
      %v1259 = vpop.permute.xlu0 %1258
      %1260 = vrot.lane.b32.xlu0 %v1048, 4
      %v1261 = vpop.permute.xlu0 %1260
      %1262 = vrot.lane.b32.xlu0 %v1049, 4
      %v1263 = vpop.permute.xlu0 %1262
      %1264 = vrot.lane.b32.xlu0 %v1050, 4
      %v1265 = vpop.permute.xlu0 %1264
      %1266 = vrot.lane.b32.xlu0 %v1051, 4
      %v1267 = vpop.permute.xlu0 %1266
      %1268 = vrot.lane.b32.xlu0 %v1052, 4
      %v1269 = vpop.permute.xlu0 %1268
      %1270 = vrot.lane.b32.xlu0 %v1053, 4
      %v1271 = vpop.permute.xlu0 %1270
      %1272 = vrot.lane.b32.xlu0 %v1054, 4
      %v1273 = vpop.permute.xlu0 %1272
      %1274 = vrot.lane.b32.xlu0 %v1055, 4
      %v1275 = vpop.permute.xlu0 %1274
      %1276 = vrot.lane.b32.xlu0 %v1056, 4
      %v1277 = vpop.permute.xlu0 %1276
      %1278 = vrot.lane.b32.xlu0 %v1057, 4
      %v1279 = vpop.permute.xlu0 %1278
      %1280 = vrot.lane.b32.xlu0 %v1058, 4
      %v1281 = vpop.permute.xlu0 %1280
      %1282 = vrot.lane.b32.xlu0 %v1059, 4
      %v1283 = vpop.permute.xlu0 %1282
      %1284 = vrot.lane.b32.xlu0 %v1060, 4
      %v1285 = vpop.permute.xlu0 %1284
      %1286 = vrot.lane.b32.xlu0 %v1061, 4
      %v1287 = vpop.permute.xlu0 %1286
      %1288 = vrot.lane.b32.xlu0 %v1062, 4
      %v1289 = vpop.permute.xlu0 %1288
      %1290 = vrot.lane.b32.xlu0 %v1063, 4
      %v1291 = vpop.permute.xlu0 %1290
      %1292 = vrot.lane.b32.xlu0 %v1064, 4
      %v1293 = vpop.permute.xlu0 %1292
      %1294 = vrot.lane.b32.xlu0 %v1065, 4
      %v1295 = vpop.permute.xlu0 %1294
      %1296 = vrot.lane.b32.xlu0 %v1066, 4
      %v1297 = vpop.permute.xlu0 %1296
      %1338 = vrot.lane.b32.xlu0 %v1218, 8
      %v1339 = vpop.permute.xlu0 %1338
      %1340 = vrot.lane.b32.xlu0 %v1219, 8
      %v1341 = vpop.permute.xlu0 %1340
      %1342 = vrot.lane.b32.xlu0 %v1220, 8
      %v1343 = vpop.permute.xlu0 %1342
      %1344 = vrot.lane.b32.xlu0 %v1221, 8
      %v1345 = vpop.permute.xlu0 %1344
      %1346 = vrot.lane.b32.xlu0 %v1222, 8
      %v1347 = vpop.permute.xlu0 %1346
      %1348 = vrot.lane.b32.xlu0 %v1223, 8
      %v1349 = vpop.permute.xlu0 %1348
      %1350 = vrot.lane.b32.xlu0 %v1224, 8
      %v1351 = vpop.permute.xlu0 %1350
      %1352 = vrot.lane.b32.xlu0 %v1225, 8
      %v1353 = vpop.permute.xlu0 %1352
      %1354 = vrot.lane.b32.xlu0 %v1226, 8
      %v1355 = vpop.permute.xlu0 %1354
      %1356 = vrot.lane.b32.xlu0 %v1227, 8
      %v1357 = vpop.permute.xlu0 %1356
      %1358 = vrot.lane.b32.xlu0 %v1228, 8
      %v1359 = vpop.permute.xlu0 %1358
      %1360 = vrot.lane.b32.xlu0 %v1229, 8
      %v1361 = vpop.permute.xlu0 %1360
      %1362 = vrot.lane.b32.xlu0 %v1230, 8
      %v1363 = vpop.permute.xlu0 %1362
      %1364 = vrot.lane.b32.xlu0 %v1231, 8
      %v1365 = vpop.permute.xlu0 %1364
      %1366 = vrot.lane.b32.xlu0 %v1232, 8
      %v1367 = vpop.permute.xlu0 %1366
      %1368 = vrot.lane.b32.xlu0 %v1233, 8
      %v1369 = vpop.permute.xlu0 %1368
      %1370 = vrot.lane.b32.xlu0 %v1234, 8
      %v1371 = vpop.permute.xlu0 %1370
      %1372 = vrot.lane.b32.xlu0 %v1235, 8
      %v1373 = vpop.permute.xlu0 %1372
      %1374 = vrot.lane.b32.xlu0 %v1236, 8
      %v1375 = vpop.permute.xlu0 %1374
      %1376 = vrot.lane.b32.xlu0 %v1237, 8
      %v1377 = vpop.permute.xlu0 %1376
      %v1398 = vsel %vm734, %v876, %v1259
      %v1399 = vsel %vm734, %v877, %v1261
      %v1400 = vsel %vm734, %v878, %v1263
      %v1401 = vsel %vm734, %v879, %v1265
      %v1402 = vsel %vm734, %v880, %v1267
      %v1403 = vsel %vm734, %v881, %v1269
      %v1404 = vsel %vm734, %v882, %v1271
      %v1405 = vsel %vm734, %v883, %v1273
      %v1406 = vsel %vm734, %v884, %v1275
      %v1407 = vsel %vm734, %v885, %v1277
      %v1408 = vsel %vm734, %v886, %v1279
      %v1409 = vsel %vm734, %v887, %v1281
      %v1410 = vsel %vm734, %v888, %v1283
      %v1411 = vsel %vm734, %v889, %v1285
      %v1412 = vsel %vm734, %v890, %v1287
      %v1413 = vsel %vm734, %v891, %v1289
      %v1414 = vsel %vm734, %v892, %v1291
      %v1415 = vsel %vm734, %v893, %v1293
      %v1416 = vsel %vm734, %v894, %v1295
      %v1417 = vsel %vm734, %v895, %v1297
      %vm1418 = vcmask 64512
      %v1419 = vsel %vm1418, %v1398, %v1339
      %v1420 = vsel %vm1418, %v1399, %v1341
      %v1421 = vsel %vm1418, %v1400, %v1343
      %v1422 = vsel %vm1418, %v1401, %v1345
      %v1423 = vsel %vm1418, %v1402, %v1347
      %v1424 = vsel %vm1418, %v1403, %v1349
      %v1425 = vsel %vm1418, %v1404, %v1351
      %v1426 = vsel %vm1418, %v1405, %v1353
      %v1427 = vsel %vm1418, %v1406, %v1355
      %v1428 = vsel %vm1418, %v1407, %v1357
      %v1429 = vsel %vm1418, %v1408, %v1359
      %v1430 = vsel %vm1418, %v1409, %v1361
      %v1431 = vsel %vm1418, %v1410, %v1363
      %v1432 = vsel %vm1418, %v1411, %v1365
      %v1433 = vsel %vm1418, %v1412, %v1367
      %v1434 = vsel %vm1418, %v1413, %v1369
      %v1435 = vsel %vm1418, %v1414, %v1371
      %v1436 = vsel %vm1418, %v1415, %v1373
      %v1437 = vsel %vm1418, %v1416, %v1375
      %v1438 = vsel %vm1418, %v1417, %v1377
      %v1439 = vlaneseq
      %v1440 = vshrl.u32 %v1439, 7
      %v1441 = vadd.s32 %v1440, 8
      %v1442 = vadd.s32 %v1440, 16
      %v1443 = vadd.s32 %v1440, 24
      %v1444 = vadd.s32 %v1440, 32
      %v1445 = vadd.s32 %v1440, 40
      %v1446 = vadd.s32 %v1440, 48
      %v1447 = vadd.s32 %v1440, 56
      %v1448 = vadd.s32 %v1440, 64
      %v1449 = vadd.s32 %v1440, 72
      %v1450 = vadd.s32 %v1440, 80
      %v1451 = vadd.s32 %v1440, 88
      %v1452 = vadd.s32 %v1440, 96
      %v1453 = vadd.s32 %v1440, 104
      %v1454 = vadd.s32 %v1440, 112
      %v1455 = vadd.s32 %v1440, 120
      %v1456 = vadd.s32 %v1440, 128
      %v1457 = vadd.s32 %v1440, 136
      %v1458 = vadd.s32 %v1440, 144
      %v1459 = vadd.s32 %v1440, 152
      %p1460 = scmp.eq.s32.totalorder %s31, 0
      %vm1461 = vcmp.lt.s32.totalorder %v1440, 16
      %vm1462 = vcmp.lt.s32.totalorder %v1441, 16
      %vm1463 = vcmp.lt.s32.totalorder %v1442, 16
      %vm1464 = vcmp.lt.s32.totalorder %v1443, 16
      %vm1465 = vcmp.lt.s32.totalorder %v1444, 16
      %vm1466 = vcmp.lt.s32.totalorder %v1445, 16
      %vm1467 = vcmp.lt.s32.totalorder %v1446, 16
      %vm1468 = vcmp.lt.s32.totalorder %v1447, 16
      %vm1469 = vcmp.lt.s32.totalorder %v1448, 16
      %vm1470 = vcmp.lt.s32.totalorder %v1449, 16
      %vm1471 = vcmp.lt.s32.totalorder %v1450, 16
      %vm1472 = vcmp.lt.s32.totalorder %v1451, 16
      %vm1473 = vcmp.lt.s32.totalorder %v1452, 16
      %vm1474 = vcmp.lt.s32.totalorder %v1453, 16
      %vm1475 = vcmp.lt.s32.totalorder %v1454, 16
      %vm1476 = vcmp.lt.s32.totalorder %v1455, 16
      %vm1477 = vcmp.lt.s32.totalorder %v1456, 16
      %vm1478 = vcmp.lt.s32.totalorder %v1457, 16
      %vm1479 = vcmp.lt.s32.totalorder %v1458, 16
      %vm1480 = vcmp.lt.s32.totalorder %v1459, 16
      %s1481 = scalar_select %p1460, 1, 0
      %v1482 = vstv %s1481
      %vm1483 = vcmp.eq.s32.totalorder %v1482, 1
      %vm1484 = vmand %vm1483, %vm1461
      %vm1485 = vmand %vm1483, %vm1462
      %vm1486 = vmand %vm1483, %vm1463
      %vm1487 = vmand %vm1483, %vm1464
      %vm1488 = vmand %vm1483, %vm1465
      %vm1489 = vmand %vm1483, %vm1466
      %vm1490 = vmand %vm1483, %vm1467
      %vm1491 = vmand %vm1483, %vm1468
      %vm1492 = vmand %vm1483, %vm1469
      %vm1493 = vmand %vm1483, %vm1470
      %vm1494 = vmand %vm1483, %vm1471
      %vm1495 = vmand %vm1483, %vm1472
      %vm1496 = vmand %vm1483, %vm1473
      %vm1497 = vmand %vm1483, %vm1474
      %vm1498 = vmand %vm1483, %vm1475
      %vm1499 = vmand %vm1483, %vm1476
      %vm1500 = vmand %vm1483, %vm1477
      %vm1501 = vmand %vm1483, %vm1478
      %vm1502 = vmand %vm1483, %vm1479
      %vm1503 = vmand %vm1483, %vm1480
      %p1504 = scmp.eq.s32.totalorder %s31, 1
      %vm1505 = vcmp.ge.s32.totalorder %v1440, 144
      %vm1506 = vcmp.ge.s32.totalorder %v1441, 144
      %vm1507 = vcmp.ge.s32.totalorder %v1442, 144
      %vm1508 = vcmp.ge.s32.totalorder %v1443, 144
      %vm1509 = vcmp.ge.s32.totalorder %v1444, 144
      %vm1510 = vcmp.ge.s32.totalorder %v1445, 144
      %vm1511 = vcmp.ge.s32.totalorder %v1446, 144
      %vm1512 = vcmp.ge.s32.totalorder %v1447, 144
      %vm1513 = vcmp.ge.s32.totalorder %v1448, 144
      %vm1514 = vcmp.ge.s32.totalorder %v1449, 144
      %vm1515 = vcmp.ge.s32.totalorder %v1450, 144
      %vm1516 = vcmp.ge.s32.totalorder %v1451, 144
      %vm1517 = vcmp.ge.s32.totalorder %v1452, 144
      %vm1518 = vcmp.ge.s32.totalorder %v1453, 144
      %vm1519 = vcmp.ge.s32.totalorder %v1454, 144
      %vm1520 = vcmp.ge.s32.totalorder %v1455, 144
      %vm1521 = vcmp.ge.s32.totalorder %v1456, 144
      %vm1522 = vcmp.ge.s32.totalorder %v1457, 144
      %vm1523 = vcmp.ge.s32.totalorder %v1458, 144
      %vm1524 = vcmp.ge.s32.totalorder %v1459, 144
      %s1525 = scalar_select %p1504, 1, 0
      %v1526 = vstv %s1525
      %vm1527 = vcmp.eq.s32.totalorder %v1526, 1
      %vm1528 = vmand %vm1527, %vm1505
      %vm1529 = vmand %vm1527, %vm1506
      %vm1530 = vmand %vm1527, %vm1507
      %vm1531 = vmand %vm1527, %vm1508
      %vm1532 = vmand %vm1527, %vm1509
      %vm1533 = vmand %vm1527, %vm1510
      %vm1534 = vmand %vm1527, %vm1511
      %vm1535 = vmand %vm1527, %vm1512
      %vm1536 = vmand %vm1527, %vm1513
      %vm1537 = vmand %vm1527, %vm1514
      %vm1538 = vmand %vm1527, %vm1515
      %vm1539 = vmand %vm1527, %vm1516
      %vm1540 = vmand %vm1527, %vm1517
      %vm1541 = vmand %vm1527, %vm1518
      %vm1542 = vmand %vm1527, %vm1519
      %vm1543 = vmand %vm1527, %vm1520
      %vm1544 = vmand %vm1527, %vm1521
      %vm1545 = vmand %vm1527, %vm1522
      %vm1546 = vmand %vm1527, %vm1523
      %vm1547 = vmand %vm1527, %vm1524
      %vm1548 = vmor %vm1484, %vm1528
      %vm1549 = vmor %vm1485, %vm1529
      %vm1550 = vmor %vm1486, %vm1530
      %vm1551 = vmor %vm1487, %vm1531
      %vm1552 = vmor %vm1488, %vm1532
      %vm1553 = vmor %vm1489, %vm1533
      %vm1554 = vmor %vm1490, %vm1534
      %vm1555 = vmor %vm1491, %vm1535
      %vm1556 = vmor %vm1492, %vm1536
      %vm1557 = vmor %vm1493, %vm1537
      %vm1558 = vmor %vm1494, %vm1538
      %vm1559 = vmor %vm1495, %vm1539
      %vm1560 = vmor %vm1496, %vm1540
      %vm1561 = vmor %vm1497, %vm1541
      %vm1562 = vmor %vm1498, %vm1542
      %vm1563 = vmor %vm1499, %vm1543
      %vm1564 = vmor %vm1500, %vm1544
      %vm1565 = vmor %vm1501, %vm1545
      %vm1566 = vmor %vm1502, %vm1546
      %vm1567 = vmor %vm1503, %vm1547
      %v1568 = vsel %vm1548, 1, 0
      %v1569 = vsel %vm1549, 1, 0
      %v1570 = vsel %vm1550, 1, 0
      %v1571 = vsel %vm1551, 1, 0
      %v1572 = vsel %vm1552, 1, 0
      %v1573 = vsel %vm1553, 1, 0
      %v1574 = vsel %vm1554, 1, 0
      %v1575 = vsel %vm1555, 1, 0
      %v1576 = vsel %vm1556, 1, 0
      %v1577 = vsel %vm1557, 1, 0
      %v1578 = vsel %vm1558, 1, 0
      %v1579 = vsel %vm1559, 1, 0
      %v1580 = vsel %vm1560, 1, 0
      %v1581 = vsel %vm1561, 1, 0
      %v1582 = vsel %vm1562, 1, 0
      %v1583 = vsel %vm1563, 1, 0
      %v1584 = vsel %vm1564, 1, 0
      %v1585 = vsel %vm1565, 1, 0
      %v1586 = vsel %vm1566, 1, 0
      %v1587 = vsel %vm1567, 1, 0
      %vm1588 = vcmp.eq.s32.totalorder %v1568, 1
      %vm1589 = vcmp.eq.s32.totalorder %v1569, 1
      %vm1590 = vcmp.eq.s32.totalorder %v1570, 1
      %vm1591 = vcmp.eq.s32.totalorder %v1571, 1
      %vm1592 = vcmp.eq.s32.totalorder %v1572, 1
      %vm1593 = vcmp.eq.s32.totalorder %v1573, 1
      %vm1594 = vcmp.eq.s32.totalorder %v1574, 1
      %vm1595 = vcmp.eq.s32.totalorder %v1575, 1
      %vm1596 = vcmp.eq.s32.totalorder %v1576, 1
      %vm1597 = vcmp.eq.s32.totalorder %v1577, 1
      %vm1598 = vcmp.eq.s32.totalorder %v1578, 1
      %vm1599 = vcmp.eq.s32.totalorder %v1579, 1
      %vm1600 = vcmp.eq.s32.totalorder %v1580, 1
      %vm1601 = vcmp.eq.s32.totalorder %v1581, 1
      %vm1602 = vcmp.eq.s32.totalorder %v1582, 1
      %vm1603 = vcmp.eq.s32.totalorder %v1583, 1
      %vm1604 = vcmp.eq.s32.totalorder %v1584, 1
      %vm1605 = vcmp.eq.s32.totalorder %v1585, 1
      %vm1606 = vcmp.eq.s32.totalorder %v1586, 1
      %vm1607 = vcmp.eq.s32.totalorder %v1587, 1
      %v1608 = vsel %vm1588, 0.0, %v1419
      %v1609 = vsel %vm1589, 0.0, %v1420
      %v1610 = vsel %vm1590, 0.0, %v1421
      %v1611 = vsel %vm1591, 0.0, %v1422
      %v1612 = vsel %vm1592, 0.0, %v1423
      %v1613 = vsel %vm1593, 0.0, %v1424
      %v1614 = vsel %vm1594, 0.0, %v1425
      %v1615 = vsel %vm1595, 0.0, %v1426
      %v1616 = vsel %vm1596, 0.0, %v1427
      %v1617 = vsel %vm1597, 0.0, %v1428
      %v1618 = vsel %vm1598, 0.0, %v1429
      %v1619 = vsel %vm1599, 0.0, %v1430
      %v1620 = vsel %vm1600, 0.0, %v1431
      %v1621 = vsel %vm1601, 0.0, %v1432
      %v1622 = vsel %vm1602, 0.0, %v1433
      %v1623 = vsel %vm1603, 0.0, %v1434
      %v1624 = vsel %vm1604, 0.0, %v1435
      %v1625 = vsel %vm1605, 0.0, %v1436
      %v1626 = vsel %vm1606, 0.0, %v1437
      %v1627 = vsel %vm1607, 0.0, %v1438
      %vm1628 = vcmp.lt.s32.totalorder %v1440, 0
      %v1629 = vsub.s32 0, %v1440
      %v1630 = vsel %vm1628, %v1629, %v1440
      %v1631 = vshrl.u32 %v1630, 4
      %v1632 = vand.u32 %v1630, 15
      %v1633 = vsub.s32 0, %v1632
      %v1634 = vsel %vm1628, %v1633, %v1632
      %vm1635 = vcmp.lt.s32.totalorder %v1441, 0
      %v1636 = vsub.s32 0, %v1441
      %v1637 = vsel %vm1635, %v1636, %v1441
      %v1638 = vshrl.u32 %v1637, 4
      %v1639 = vand.u32 %v1637, 15
      %v1640 = vsub.s32 0, %v1639
      %v1641 = vsel %vm1635, %v1640, %v1639
      %vm1642 = vcmp.lt.s32.totalorder %v1442, 0
      %v1643 = vsub.s32 0, %v1442
      %v1644 = vsel %vm1642, %v1643, %v1442
      %v1645 = vshrl.u32 %v1644, 4
      %v1646 = vand.u32 %v1644, 15
      %v1647 = vsub.s32 0, %v1646
      %v1648 = vsel %vm1642, %v1647, %v1646
      %vm1649 = vcmp.lt.s32.totalorder %v1443, 0
      %v1650 = vsub.s32 0, %v1443
      %v1651 = vsel %vm1649, %v1650, %v1443
      %v1652 = vshrl.u32 %v1651, 4
      %v1653 = vand.u32 %v1651, 15
      %v1654 = vsub.s32 0, %v1653
      %v1655 = vsel %vm1649, %v1654, %v1653
      %vm1656 = vcmp.lt.s32.totalorder %v1444, 0
      %v1657 = vsub.s32 0, %v1444
      %v1658 = vsel %vm1656, %v1657, %v1444
      %v1659 = vshrl.u32 %v1658, 4
      %v1660 = vand.u32 %v1658, 15
      %v1661 = vsub.s32 0, %v1660
      %v1662 = vsel %vm1656, %v1661, %v1660
      %vm1663 = vcmp.lt.s32.totalorder %v1445, 0
      %v1664 = vsub.s32 0, %v1445
      %v1665 = vsel %vm1663, %v1664, %v1445
      %v1666 = vshrl.u32 %v1665, 4
      %v1667 = vand.u32 %v1665, 15
      %v1668 = vsub.s32 0, %v1667
      %v1669 = vsel %vm1663, %v1668, %v1667
      %vm1670 = vcmp.lt.s32.totalorder %v1446, 0
      %v1671 = vsub.s32 0, %v1446
      %v1672 = vsel %vm1670, %v1671, %v1446
      %v1673 = vshrl.u32 %v1672, 4
      %v1674 = vand.u32 %v1672, 15
      %v1675 = vsub.s32 0, %v1674
      %v1676 = vsel %vm1670, %v1675, %v1674
      %vm1677 = vcmp.lt.s32.totalorder %v1447, 0
      %v1678 = vsub.s32 0, %v1447
      %v1679 = vsel %vm1677, %v1678, %v1447
      %v1680 = vshrl.u32 %v1679, 4
      %v1681 = vand.u32 %v1679, 15
      %v1682 = vsub.s32 0, %v1681
      %v1683 = vsel %vm1677, %v1682, %v1681
      %vm1684 = vcmp.lt.s32.totalorder %v1448, 0
      %v1685 = vsub.s32 0, %v1448
      %v1686 = vsel %vm1684, %v1685, %v1448
      %v1687 = vshrl.u32 %v1686, 4
      %v1688 = vand.u32 %v1686, 15
      %v1689 = vsub.s32 0, %v1688
      %v1690 = vsel %vm1684, %v1689, %v1688
      %vm1691 = vcmp.lt.s32.totalorder %v1449, 0
      %v1692 = vsub.s32 0, %v1449
      %v1693 = vsel %vm1691, %v1692, %v1449
      %v1694 = vshrl.u32 %v1693, 4
      %v1695 = vand.u32 %v1693, 15
      %v1696 = vsub.s32 0, %v1695
      %v1697 = vsel %vm1691, %v1696, %v1695
      %vm1698 = vcmp.lt.s32.totalorder %v1450, 0
      %v1699 = vsub.s32 0, %v1450
      %v1700 = vsel %vm1698, %v1699, %v1450
      %v1701 = vshrl.u32 %v1700, 4
      %v1702 = vand.u32 %v1700, 15
      %v1703 = vsub.s32 0, %v1702
      %v1704 = vsel %vm1698, %v1703, %v1702
      %vm1705 = vcmp.lt.s32.totalorder %v1451, 0
      %v1706 = vsub.s32 0, %v1451
      %v1707 = vsel %vm1705, %v1706, %v1451
      %v1708 = vshrl.u32 %v1707, 4
      %v1709 = vand.u32 %v1707, 15
      %v1710 = vsub.s32 0, %v1709
      %v1711 = vsel %vm1705, %v1710, %v1709
      %vm1712 = vcmp.lt.s32.totalorder %v1452, 0
      %v1713 = vsub.s32 0, %v1452
      %v1714 = vsel %vm1712, %v1713, %v1452
      %v1715 = vshrl.u32 %v1714, 4
      %v1716 = vand.u32 %v1714, 15
      %v1717 = vsub.s32 0, %v1716
      %v1718 = vsel %vm1712, %v1717, %v1716
      %vm1719 = vcmp.lt.s32.totalorder %v1453, 0
      %v1720 = vsub.s32 0, %v1453
      %v1721 = vsel %vm1719, %v1720, %v1453
      %v1722 = vshrl.u32 %v1721, 4
      %v1723 = vand.u32 %v1721, 15
      %v1724 = vsub.s32 0, %v1723
      %v1725 = vsel %vm1719, %v1724, %v1723
      %vm1726 = vcmp.lt.s32.totalorder %v1454, 0
      %v1727 = vsub.s32 0, %v1454
      %v1728 = vsel %vm1726, %v1727, %v1454
      %v1729 = vshrl.u32 %v1728, 4
      %v1730 = vand.u32 %v1728, 15
      %v1731 = vsub.s32 0, %v1730
      %v1732 = vsel %vm1726, %v1731, %v1730
      %vm1733 = vcmp.lt.s32.totalorder %v1455, 0
      %v1734 = vsub.s32 0, %v1455
      %v1735 = vsel %vm1733, %v1734, %v1455
      %v1736 = vshrl.u32 %v1735, 4
      %v1737 = vand.u32 %v1735, 15
      %v1738 = vsub.s32 0, %v1737
      %v1739 = vsel %vm1733, %v1738, %v1737
      %vm1740 = vcmp.ne.s32.totalorder %v1634, 0
      %vm1741 = vcmp.ne.s32.totalorder %v1641, 0
      %vm1742 = vcmp.ne.s32.totalorder %v1648, 0
      %vm1743 = vcmp.ne.s32.totalorder %v1655, 0
      %vm1744 = vcmp.ne.s32.totalorder %v1662, 0
      %vm1745 = vcmp.ne.s32.totalorder %v1669, 0
      %vm1746 = vcmp.ne.s32.totalorder %v1676, 0
      %vm1747 = vcmp.ne.s32.totalorder %v1683, 0
      %vm1748 = vcmp.ne.s32.totalorder %v1690, 0
      %vm1749 = vcmp.ne.s32.totalorder %v1697, 0
      %vm1750 = vcmp.ne.s32.totalorder %v1704, 0
      %vm1751 = vcmp.ne.s32.totalorder %v1711, 0
      %vm1752 = vcmp.ne.s32.totalorder %v1718, 0
      %vm1753 = vcmp.ne.s32.totalorder %v1725, 0
      %vm1754 = vcmp.ne.s32.totalorder %v1732, 0
      %vm1755 = vcmp.ne.s32.totalorder %v1739, 0
      %vm1756 = vcmp.lt.s32.totalorder %v1634, 0
      %vm1757 = vcmp.lt.s32.totalorder %v1641, 0
      %vm1758 = vcmp.lt.s32.totalorder %v1648, 0
      %vm1759 = vcmp.lt.s32.totalorder %v1655, 0
      %vm1760 = vcmp.lt.s32.totalorder %v1662, 0
      %vm1761 = vcmp.lt.s32.totalorder %v1669, 0
      %vm1762 = vcmp.lt.s32.totalorder %v1676, 0
      %vm1763 = vcmp.lt.s32.totalorder %v1683, 0
      %vm1764 = vcmp.lt.s32.totalorder %v1690, 0
      %vm1765 = vcmp.lt.s32.totalorder %v1697, 0
      %vm1766 = vcmp.lt.s32.totalorder %v1704, 0
      %vm1767 = vcmp.lt.s32.totalorder %v1711, 0
      %vm1768 = vcmp.lt.s32.totalorder %v1718, 0
      %vm1769 = vcmp.lt.s32.totalorder %v1725, 0
      %vm1770 = vcmp.lt.s32.totalorder %v1732, 0
      %vm1771 = vcmp.lt.s32.totalorder %v1739, 0
      %vm1772 = vmand %vm1756, %vm1740
      %vm1773 = vmand %vm1757, %vm1741
      %vm1774 = vmand %vm1758, %vm1742
      %vm1775 = vmand %vm1759, %vm1743
      %vm1776 = vmand %vm1760, %vm1744
      %vm1777 = vmand %vm1761, %vm1745
      %vm1778 = vmand %vm1762, %vm1746
      %vm1779 = vmand %vm1763, %vm1747
      %vm1780 = vmand %vm1764, %vm1748
      %vm1781 = vmand %vm1765, %vm1749
      %vm1782 = vmand %vm1766, %vm1750
      %vm1783 = vmand %vm1767, %vm1751
      %vm1784 = vmand %vm1768, %vm1752
      %vm1785 = vmand %vm1769, %vm1753
      %vm1786 = vmand %vm1770, %vm1754
      %vm1787 = vmand %vm1771, %vm1755
      %v1788 = vadd.s32 %v1634, 16
      %v1789 = vadd.s32 %v1641, 16
      %v1790 = vadd.s32 %v1648, 16
      %v1791 = vadd.s32 %v1655, 16
      %v1792 = vadd.s32 %v1662, 16
      %v1793 = vadd.s32 %v1669, 16
      %v1794 = vadd.s32 %v1676, 16
      %v1795 = vadd.s32 %v1683, 16
      %v1796 = vadd.s32 %v1690, 16
      %v1797 = vadd.s32 %v1697, 16
      %v1798 = vadd.s32 %v1704, 16
      %v1799 = vadd.s32 %v1711, 16
      %v1800 = vadd.s32 %v1718, 16
      %v1801 = vadd.s32 %v1725, 16
      %v1802 = vadd.s32 %v1732, 16
      %v1803 = vadd.s32 %v1739, 16
      %v1804 = vsel %vm1772, %v1788, %v1634
      %v1805 = vsel %vm1773, %v1789, %v1641
      %v1806 = vsel %vm1774, %v1790, %v1648
      %v1807 = vsel %vm1775, %v1791, %v1655
      %v1808 = vsel %vm1776, %v1792, %v1662
      %v1809 = vsel %vm1777, %v1793, %v1669
      %v1810 = vsel %vm1778, %v1794, %v1676
      %v1811 = vsel %vm1779, %v1795, %v1683
      %v1812 = vsel %vm1780, %v1796, %v1690
      %v1813 = vsel %vm1781, %v1797, %v1697
      %v1814 = vsel %vm1782, %v1798, %v1704
      %v1815 = vsel %vm1783, %v1799, %v1711
      %v1816 = vsel %vm1784, %v1800, %v1718
      %v1817 = vsel %vm1785, %v1801, %v1725
      %v1818 = vsel %vm1786, %v1802, %v1732
      %v1819 = vsel %vm1787, %v1803, %v1739
      %v1820 = vrot.slane %v1608, 7
      %v1821 = vrot.slane %v1609, 7
      %v1822 = vrot.slane %v1610, 7
      %v1823 = vrot.slane %v1611, 7
      %v1824 = vrot.slane %v1612, 7
      %v1825 = vrot.slane %v1613, 7
      %v1826 = vrot.slane %v1614, 7
      %v1827 = vrot.slane %v1615, 7
      %v1828 = vrot.slane %v1616, 7
      %v1829 = vrot.slane %v1617, 7
      %v1830 = vrot.slane %v1618, 7
      %v1831 = vrot.slane %v1619, 7
      %v1832 = vrot.slane %v1620, 7
      %v1833 = vrot.slane %v1621, 7
      %v1834 = vrot.slane %v1622, 7
      %v1835 = vrot.slane %v1623, 7
      %v1836 = vrot.slane %v1627, 7
      %vm1837 = vcmp.lt.s32.totalorder %v1440, 1
      %v1838 = vsel %vm1837, %v1834, %v1835
      %v1839 = vsel %vm1837, %v1833, %v1834
      %v1840 = vsel %vm1837, %v1832, %v1833
      %v1841 = vsel %vm1837, %v1831, %v1832
      %v1842 = vsel %vm1837, %v1830, %v1831
      %v1843 = vsel %vm1837, %v1829, %v1830
      %v1844 = vsel %vm1837, %v1828, %v1829
      %v1845 = vsel %vm1837, %v1827, %v1828
      %v1846 = vsel %vm1837, %v1826, %v1827
      %v1847 = vsel %vm1837, %v1825, %v1826
      %v1848 = vsel %vm1837, %v1824, %v1825
      %v1849 = vsel %vm1837, %v1823, %v1824
      %v1850 = vsel %vm1837, %v1822, %v1823
      %v1851 = vsel %vm1837, %v1821, %v1822
      %v1852 = vsel %vm1837, %v1820, %v1821
      %v1853 = vsel %vm1837, %v1836, %v1820
      %vm1854 = vcmp.ge.s32.totalorder %v1804, 1
      %vm1855 = vcmp.ge.s32.totalorder %v1805, 1
      %vm1856 = vcmp.ge.s32.totalorder %v1806, 1
      %vm1857 = vcmp.ge.s32.totalorder %v1807, 1
      %vm1858 = vcmp.ge.s32.totalorder %v1808, 1
      %vm1859 = vcmp.ge.s32.totalorder %v1809, 1
      %vm1860 = vcmp.ge.s32.totalorder %v1810, 1
      %vm1861 = vcmp.ge.s32.totalorder %v1811, 1
      %vm1862 = vcmp.ge.s32.totalorder %v1812, 1
      %vm1863 = vcmp.ge.s32.totalorder %v1813, 1
      %vm1864 = vcmp.ge.s32.totalorder %v1814, 1
      %vm1865 = vcmp.ge.s32.totalorder %v1815, 1
      %vm1866 = vcmp.ge.s32.totalorder %v1816, 1
      %vm1867 = vcmp.ge.s32.totalorder %v1817, 1
      %vm1868 = vcmp.ge.s32.totalorder %v1818, 1
      %vm1869 = vcmp.ge.s32.totalorder %v1819, 1
      %v1870 = vsel %vm1854, 1, 0
      %v1871 = vsel %vm1855, 1, 0
      %v1872 = vsel %vm1856, 1, 0
      %v1873 = vsel %vm1857, 1, 0
      %v1874 = vsel %vm1858, 1, 0
      %v1875 = vsel %vm1859, 1, 0
      %v1876 = vsel %vm1860, 1, 0
      %v1877 = vsel %vm1861, 1, 0
      %v1878 = vsel %vm1862, 1, 0
      %v1879 = vsel %vm1863, 1, 0
      %v1880 = vsel %vm1864, 1, 0
      %v1881 = vsel %vm1865, 1, 0
      %v1882 = vsel %vm1866, 1, 0
      %v1883 = vsel %vm1867, 1, 0
      %v1884 = vsel %vm1868, 1, 0
      %v1885 = vsel %vm1869, 1, 0
      %vm1886 = vcmp.eq.s32.totalorder %v1870, 1
      %vm1887 = vcmp.eq.s32.totalorder %v1871, 1
      %vm1888 = vcmp.eq.s32.totalorder %v1872, 1
      %vm1889 = vcmp.eq.s32.totalorder %v1873, 1
      %vm1890 = vcmp.eq.s32.totalorder %v1874, 1
      %vm1891 = vcmp.eq.s32.totalorder %v1875, 1
      %vm1892 = vcmp.eq.s32.totalorder %v1876, 1
      %vm1893 = vcmp.eq.s32.totalorder %v1877, 1
      %vm1894 = vcmp.eq.s32.totalorder %v1878, 1
      %vm1895 = vcmp.eq.s32.totalorder %v1879, 1
      %vm1896 = vcmp.eq.s32.totalorder %v1880, 1
      %vm1897 = vcmp.eq.s32.totalorder %v1881, 1
      %vm1898 = vcmp.eq.s32.totalorder %v1882, 1
      %vm1899 = vcmp.eq.s32.totalorder %v1883, 1
      %vm1900 = vcmp.eq.s32.totalorder %v1884, 1
      %vm1901 = vcmp.eq.s32.totalorder %v1885, 1
      %v1902 = vsel %vm1886, %v1853, 0.0
      %v1903 = vsel %vm1887, %v1852, 0.0
      %v1904 = vsel %vm1888, %v1851, 0.0
      %v1905 = vsel %vm1889, %v1850, 0.0
      %v1906 = vsel %vm1890, %v1849, 0.0
      %v1907 = vsel %vm1891, %v1848, 0.0
      %v1908 = vsel %vm1892, %v1847, 0.0
      %v1909 = vsel %vm1893, %v1846, 0.0
      %v1910 = vsel %vm1894, %v1845, 0.0
      %v1911 = vsel %vm1895, %v1844, 0.0
      %v1912 = vsel %vm1896, %v1843, 0.0
      %v1913 = vsel %vm1897, %v1842, 0.0
      %v1914 = vsel %vm1898, %v1841, 0.0
      %v1915 = vsel %vm1899, %v1840, 0.0
      %v1916 = vsel %vm1900, %v1839, 0.0
      %v1917 = vsel %vm1901, %v1838, 0.0
      %v1918 = vpack.c.bf16 %v1902, %v1902
      %v1919 = vpack.c.bf16 %v1903, %v1903
      %v1920 = vpack.c.bf16 %v1904, %v1904
      %v1921 = vpack.c.bf16 %v1905, %v1905
      %v1922 = vpack.c.bf16 %v1906, %v1906
      %v1923 = vpack.c.bf16 %v1907, %v1907
      %v1924 = vpack.c.bf16 %v1908, %v1908
      %v1925 = vpack.c.bf16 %v1909, %v1909
      %v1926 = vpack.c.bf16 %v1910, %v1910
      %v1927 = vpack.c.bf16 %v1911, %v1911
      %v1928 = vpack.c.bf16 %v1912, %v1912
      %v1929 = vpack.c.bf16 %v1913, %v1913
      %v1930 = vpack.c.bf16 %v1914, %v1914
      %v1931 = vpack.c.bf16 %v1915, %v1915
      %v1932 = vpack.c.bf16 %v1916, %v1916
      %v1933 = vpack.c.bf16 %v1917, %v1917
      %v1934 = vpack.c.bf16 %v1608, %v1608
      %v1935 = vpack.c.bf16 %v1609, %v1609
      %v1936 = vpack.c.bf16 %v1610, %v1610
      %v1937 = vpack.c.bf16 %v1611, %v1611
      %v1938 = vpack.c.bf16 %v1612, %v1612
      %v1939 = vpack.c.bf16 %v1613, %v1613
      %v1940 = vpack.c.bf16 %v1614, %v1614
      %v1941 = vpack.c.bf16 %v1615, %v1615
      %v1942 = vpack.c.bf16 %v1616, %v1616
      %v1943 = vpack.c.bf16 %v1617, %v1617
      %v1944 = vpack.c.bf16 %v1618, %v1618
      %v1945 = vpack.c.bf16 %v1619, %v1619
      %v1946 = vpack.c.bf16 %v1620, %v1620
      %v1947 = vpack.c.bf16 %v1621, %v1621
      %v1948 = vpack.c.bf16 %v1622, %v1622
      %v1949 = vpack.c.bf16 %v1623, %v1623
      %v1950 = vrot.slane %v1608, 1
      %v1951 = vrot.slane %v1609, 1
      %v1952 = vrot.slane %v1610, 1
      %v1953 = vrot.slane %v1611, 1
      %v1954 = vrot.slane %v1612, 1
      %v1955 = vrot.slane %v1613, 1
      %v1956 = vrot.slane %v1614, 1
      %v1957 = vrot.slane %v1615, 1
      %v1958 = vrot.slane %v1616, 1
      %v1959 = vrot.slane %v1617, 1
      %v1960 = vrot.slane %v1618, 1
      %v1961 = vrot.slane %v1619, 1
      %v1962 = vrot.slane %v1620, 1
      %v1963 = vrot.slane %v1621, 1
      %v1964 = vrot.slane %v1622, 1
      %v1965 = vrot.slane %v1623, 1
      %v1966 = vrot.slane %v1624, 1
      %vm1967 = vcmp.lt.s32.totalorder %v1440, 7
      %v1968 = vsel %vm1967, %v1965, %v1966
      %v1969 = vsel %vm1967, %v1964, %v1965
      %v1970 = vsel %vm1967, %v1963, %v1964
      %v1971 = vsel %vm1967, %v1962, %v1963
      %v1972 = vsel %vm1967, %v1961, %v1962
      %v1973 = vsel %vm1967, %v1960, %v1961
      %v1974 = vsel %vm1967, %v1959, %v1960
      %v1975 = vsel %vm1967, %v1958, %v1959
      %v1976 = vsel %vm1967, %v1957, %v1958
      %v1977 = vsel %vm1967, %v1956, %v1957
      %v1978 = vsel %vm1967, %v1955, %v1956
      %v1979 = vsel %vm1967, %v1954, %v1955
      %v1980 = vsel %vm1967, %v1953, %v1954
      %v1981 = vsel %vm1967, %v1952, %v1953
      %v1982 = vsel %vm1967, %v1951, %v1952
      %v1983 = vsel %vm1967, %v1950, %v1951
      %vm1984 = vcmp.le.s32.totalorder %v1804, 14
      %vm1985 = vcmp.le.s32.totalorder %v1805, 14
      %vm1986 = vcmp.le.s32.totalorder %v1806, 14
      %vm1987 = vcmp.le.s32.totalorder %v1807, 14
      %vm1988 = vcmp.le.s32.totalorder %v1808, 14
      %vm1989 = vcmp.le.s32.totalorder %v1809, 14
      %vm1990 = vcmp.le.s32.totalorder %v1810, 14
      %vm1991 = vcmp.le.s32.totalorder %v1811, 14
      %vm1992 = vcmp.le.s32.totalorder %v1812, 14
      %vm1993 = vcmp.le.s32.totalorder %v1813, 14
      %vm1994 = vcmp.le.s32.totalorder %v1814, 14
      %vm1995 = vcmp.le.s32.totalorder %v1815, 14
      %vm1996 = vcmp.le.s32.totalorder %v1816, 14
      %vm1997 = vcmp.le.s32.totalorder %v1817, 14
      %vm1998 = vcmp.le.s32.totalorder %v1818, 14
      %vm1999 = vcmp.le.s32.totalorder %v1819, 14
      %v2000 = vsel %vm1984, 1, 0
      %v2001 = vsel %vm1985, 1, 0
      %v2002 = vsel %vm1986, 1, 0
      %v2003 = vsel %vm1987, 1, 0
      %v2004 = vsel %vm1988, 1, 0
      %v2005 = vsel %vm1989, 1, 0
      %v2006 = vsel %vm1990, 1, 0
      %v2007 = vsel %vm1991, 1, 0
      %v2008 = vsel %vm1992, 1, 0
      %v2009 = vsel %vm1993, 1, 0
      %v2010 = vsel %vm1994, 1, 0
      %v2011 = vsel %vm1995, 1, 0
      %v2012 = vsel %vm1996, 1, 0
      %v2013 = vsel %vm1997, 1, 0
      %v2014 = vsel %vm1998, 1, 0
      %v2015 = vsel %vm1999, 1, 0
      %vm2016 = vcmp.eq.s32.totalorder %v2000, 1
      %vm2017 = vcmp.eq.s32.totalorder %v2001, 1
      %vm2018 = vcmp.eq.s32.totalorder %v2002, 1
      %vm2019 = vcmp.eq.s32.totalorder %v2003, 1
      %vm2020 = vcmp.eq.s32.totalorder %v2004, 1
      %vm2021 = vcmp.eq.s32.totalorder %v2005, 1
      %vm2022 = vcmp.eq.s32.totalorder %v2006, 1
      %vm2023 = vcmp.eq.s32.totalorder %v2007, 1
      %vm2024 = vcmp.eq.s32.totalorder %v2008, 1
      %vm2025 = vcmp.eq.s32.totalorder %v2009, 1
      %vm2026 = vcmp.eq.s32.totalorder %v2010, 1
      %vm2027 = vcmp.eq.s32.totalorder %v2011, 1
      %vm2028 = vcmp.eq.s32.totalorder %v2012, 1
      %vm2029 = vcmp.eq.s32.totalorder %v2013, 1
      %vm2030 = vcmp.eq.s32.totalorder %v2014, 1
      %vm2031 = vcmp.eq.s32.totalorder %v2015, 1
      %v2032 = vsel %vm2016, %v1983, 0.0
      %v2033 = vsel %vm2017, %v1982, 0.0
      %v2034 = vsel %vm2018, %v1981, 0.0
      %v2035 = vsel %vm2019, %v1980, 0.0
      %v2036 = vsel %vm2020, %v1979, 0.0
      %v2037 = vsel %vm2021, %v1978, 0.0
      %v2038 = vsel %vm2022, %v1977, 0.0
      %v2039 = vsel %vm2023, %v1976, 0.0
      %v2040 = vsel %vm2024, %v1975, 0.0
      %v2041 = vsel %vm2025, %v1974, 0.0
      %v2042 = vsel %vm2026, %v1973, 0.0
      %v2043 = vsel %vm2027, %v1972, 0.0
      %v2044 = vsel %vm2028, %v1971, 0.0
      %v2045 = vsel %vm2029, %v1970, 0.0
      %v2046 = vsel %vm2030, %v1969, 0.0
      %v2047 = vsel %vm2031, %v1968, 0.0
      %v2048 = vpack.c.bf16 %v2032, %v2032
      %v2049 = vpack.c.bf16 %v2033, %v2033
      %v2050 = vpack.c.bf16 %v2034, %v2034
      %v2051 = vpack.c.bf16 %v2035, %v2035
      %v2052 = vpack.c.bf16 %v2036, %v2036
      %v2053 = vpack.c.bf16 %v2037, %v2037
      %v2054 = vpack.c.bf16 %v2038, %v2038
      %v2055 = vpack.c.bf16 %v2039, %v2039
      %v2056 = vpack.c.bf16 %v2040, %v2040
      %v2057 = vpack.c.bf16 %v2041, %v2041
      %v2058 = vpack.c.bf16 %v2042, %v2042
      %v2059 = vpack.c.bf16 %v2043, %v2043
      %v2060 = vpack.c.bf16 %v2044, %v2044
      %v2061 = vpack.c.bf16 %v2045, %v2045
      %v2062 = vpack.c.bf16 %v2046, %v2046
      %v2063 = vpack.c.bf16 %v2047, %v2047
      %v2064 = vrot.slane %v1624, 7
      %v2065 = vrot.slane %v1625, 7
      %v2066 = vsel %vm1837, %v2064, %v2065
      %v2067 = vsel %vm1837, %v1835, %v2064
      %v2068 = vsel %vm1886, %v1851, 0.0
      %v2069 = vsel %vm1887, %v1850, 0.0
      %v2070 = vsel %vm1888, %v1849, 0.0
      %v2071 = vsel %vm1889, %v1848, 0.0
      %v2072 = vsel %vm1890, %v1847, 0.0
      %v2073 = vsel %vm1891, %v1846, 0.0
      %v2074 = vsel %vm1892, %v1845, 0.0
      %v2075 = vsel %vm1893, %v1844, 0.0
      %v2076 = vsel %vm1894, %v1843, 0.0
      %v2077 = vsel %vm1895, %v1842, 0.0
      %v2078 = vsel %vm1896, %v1841, 0.0
      %v2079 = vsel %vm1897, %v1840, 0.0
      %v2080 = vsel %vm1898, %v1839, 0.0
      %v2081 = vsel %vm1899, %v1838, 0.0
      %v2082 = vsel %vm1900, %v2067, 0.0
      %v2083 = vsel %vm1901, %v2066, 0.0
      %v2084 = vpack.c.bf16 %v2068, %v2068
      %v2085 = vpack.c.bf16 %v2069, %v2069
      %v2086 = vpack.c.bf16 %v2070, %v2070
      %v2087 = vpack.c.bf16 %v2071, %v2071
      %v2088 = vpack.c.bf16 %v2072, %v2072
      %v2089 = vpack.c.bf16 %v2073, %v2073
      %v2090 = vpack.c.bf16 %v2074, %v2074
      %v2091 = vpack.c.bf16 %v2075, %v2075
      %v2092 = vpack.c.bf16 %v2076, %v2076
      %v2093 = vpack.c.bf16 %v2077, %v2077
      %v2094 = vpack.c.bf16 %v2078, %v2078
      %v2095 = vpack.c.bf16 %v2079, %v2079
      %v2096 = vpack.c.bf16 %v2080, %v2080
      %v2097 = vpack.c.bf16 %v2081, %v2081
      %v2098 = vpack.c.bf16 %v2082, %v2082
      %v2099 = vpack.c.bf16 %v2083, %v2083
      %v2100 = vpack.c.bf16 %v1624, %v1624
      %v2101 = vpack.c.bf16 %v1625, %v1625
      %v2102 = vrot.slane %v1625, 1
      %v2103 = vrot.slane %v1626, 1
      %v2104 = vsel %vm1967, %v2102, %v2103
      %v2105 = vsel %vm1967, %v1966, %v2102
      %v2106 = vsel %vm2016, %v1981, 0.0
      %v2107 = vsel %vm2017, %v1980, 0.0
      %v2108 = vsel %vm2018, %v1979, 0.0
      %v2109 = vsel %vm2019, %v1978, 0.0
      %v2110 = vsel %vm2020, %v1977, 0.0
      %v2111 = vsel %vm2021, %v1976, 0.0
      %v2112 = vsel %vm2022, %v1975, 0.0
      %v2113 = vsel %vm2023, %v1974, 0.0
      %v2114 = vsel %vm2024, %v1973, 0.0
      %v2115 = vsel %vm2025, %v1972, 0.0
      %v2116 = vsel %vm2026, %v1971, 0.0
      %v2117 = vsel %vm2027, %v1970, 0.0
      %v2118 = vsel %vm2028, %v1969, 0.0
      %v2119 = vsel %vm2029, %v1968, 0.0
      %v2120 = vsel %vm2030, %v2105, 0.0
      %v2121 = vsel %vm2031, %v2104, 0.0
      %v2122 = vpack.c.bf16 %v2106, %v2106
      %v2123 = vpack.c.bf16 %v2107, %v2107
      %v2124 = vpack.c.bf16 %v2108, %v2108
      %v2125 = vpack.c.bf16 %v2109, %v2109
      %v2126 = vpack.c.bf16 %v2110, %v2110
      %v2127 = vpack.c.bf16 %v2111, %v2111
      %v2128 = vpack.c.bf16 %v2112, %v2112
      %v2129 = vpack.c.bf16 %v2113, %v2113
      %v2130 = vpack.c.bf16 %v2114, %v2114
      %v2131 = vpack.c.bf16 %v2115, %v2115
      %v2132 = vpack.c.bf16 %v2116, %v2116
      %v2133 = vpack.c.bf16 %v2117, %v2117
      %v2134 = vpack.c.bf16 %v2118, %v2118
      %v2135 = vpack.c.bf16 %v2119, %v2119
      %v2136 = vpack.c.bf16 %v2120, %v2120
      %v2137 = vpack.c.bf16 %v2121, %v2121
      %v2138 = vrot.slane %v1626, 7
      %v2139 = vsel %vm1837, %v2138, %v1836
      %v2140 = vsel %vm1837, %v2065, %v2138
      %v2141 = vsel %vm1886, %v1849, 0.0
      %v2142 = vsel %vm1887, %v1848, 0.0
      %v2143 = vsel %vm1888, %v1847, 0.0
      %v2144 = vsel %vm1889, %v1846, 0.0
      %v2145 = vsel %vm1890, %v1845, 0.0
      %v2146 = vsel %vm1891, %v1844, 0.0
      %v2147 = vsel %vm1892, %v1843, 0.0
      %v2148 = vsel %vm1893, %v1842, 0.0
      %v2149 = vsel %vm1894, %v1841, 0.0
      %v2150 = vsel %vm1895, %v1840, 0.0
      %v2151 = vsel %vm1896, %v1839, 0.0
      %v2152 = vsel %vm1897, %v1838, 0.0
      %v2153 = vsel %vm1898, %v2067, 0.0
      %v2154 = vsel %vm1899, %v2066, 0.0
      %v2155 = vsel %vm1900, %v2140, 0.0
      %v2156 = vsel %vm1901, %v2139, 0.0
      %v2157 = vpack.c.bf16 %v2141, %v2141
      %v2158 = vpack.c.bf16 %v2142, %v2142
      %v2159 = vpack.c.bf16 %v2143, %v2143
      %v2160 = vpack.c.bf16 %v2144, %v2144
      %v2161 = vpack.c.bf16 %v2145, %v2145
      %v2162 = vpack.c.bf16 %v2146, %v2146
      %v2163 = vpack.c.bf16 %v2147, %v2147
      %v2164 = vpack.c.bf16 %v2148, %v2148
      %v2165 = vpack.c.bf16 %v2149, %v2149
      %v2166 = vpack.c.bf16 %v2150, %v2150
      %v2167 = vpack.c.bf16 %v2151, %v2151
      %v2168 = vpack.c.bf16 %v2152, %v2152
      %v2169 = vpack.c.bf16 %v2153, %v2153
      %v2170 = vpack.c.bf16 %v2154, %v2154
      %v2171 = vpack.c.bf16 %v2155, %v2155
      %v2172 = vpack.c.bf16 %v2156, %v2156
      %v2173 = vpack.c.bf16 %v1626, %v1626
      %v2174 = vpack.c.bf16 %v1627, %v1627
      %v2175 = vrot.slane %v1627, 1
      %v2176 = vsel %vm1967, %v2103, %v2175
      %v2177 = vsel %vm1967, %v2175, %v1950
      %v2178 = vsel %vm2016, %v1979, 0.0
      %v2179 = vsel %vm2017, %v1978, 0.0
      %v2180 = vsel %vm2018, %v1977, 0.0
      %v2181 = vsel %vm2019, %v1976, 0.0
      %v2182 = vsel %vm2020, %v1975, 0.0
      %v2183 = vsel %vm2021, %v1974, 0.0
      %v2184 = vsel %vm2022, %v1973, 0.0
      %v2185 = vsel %vm2023, %v1972, 0.0
      %v2186 = vsel %vm2024, %v1971, 0.0
      %v2187 = vsel %vm2025, %v1970, 0.0
      %v2188 = vsel %vm2026, %v1969, 0.0
      %v2189 = vsel %vm2027, %v1968, 0.0
      %v2190 = vsel %vm2028, %v2105, 0.0
      %v2191 = vsel %vm2029, %v2104, 0.0
      %v2192 = vsel %vm2030, %v2176, 0.0
      %v2193 = vsel %vm2031, %v2177, 0.0
      %v2194 = vpack.c.bf16 %v2178, %v2178
      %v2195 = vpack.c.bf16 %v2179, %v2179
      %v2196 = vpack.c.bf16 %v2180, %v2180
      %v2197 = vpack.c.bf16 %v2181, %v2181
      %v2198 = vpack.c.bf16 %v2182, %v2182
      %v2199 = vpack.c.bf16 %v2183, %v2183
      %v2200 = vpack.c.bf16 %v2184, %v2184
      %v2201 = vpack.c.bf16 %v2185, %v2185
      %v2202 = vpack.c.bf16 %v2186, %v2186
      %v2203 = vpack.c.bf16 %v2187, %v2187
      %v2204 = vpack.c.bf16 %v2188, %v2188
      %v2205 = vpack.c.bf16 %v2189, %v2189
      %v2206 = vpack.c.bf16 %v2190, %v2190
      %v2207 = vpack.c.bf16 %v2191, %v2191
      %v2208 = vpack.c.bf16 %v2192, %v2192
      %v2209 = vpack.c.bf16 %v2193, %v2193
      %v2226 = vunpack.c.l.b16 %v1918
      %v2227 = vunpack.c.l.b16 %v1919
      %v2228 = vunpack.c.l.b16 %v1920
      %v2229 = vunpack.c.l.b16 %v1921
      %v2230 = vunpack.c.l.b16 %v1922
      %v2231 = vunpack.c.l.b16 %v1923
      %v2232 = vunpack.c.l.b16 %v1924
      %v2233 = vunpack.c.l.b16 %v1925
      %v2234 = vunpack.c.l.b16 %v1926
      %v2235 = vunpack.c.l.b16 %v1927
      %v2236 = vunpack.c.l.b16 %v1928
      %v2237 = vunpack.c.l.b16 %v1929
      %v2238 = vunpack.c.l.b16 %v1930
      %v2239 = vunpack.c.l.b16 %v1931
      %v2240 = vunpack.c.l.b16 %v1932
      %v2241 = vunpack.c.l.b16 %v1933
      %v2242 = vpack.c.b16 %v2227, %v2226
      %v2243 = vpack.c.b16 %v2229, %v2228
      %v2244 = vpack.c.b16 %v2231, %v2230
      %v2245 = vpack.c.b16 %v2233, %v2232
      %v2246 = vpack.c.b16 %v2235, %v2234
      %v2247 = vpack.c.b16 %v2237, %v2236
      %v2248 = vpack.c.b16 %v2239, %v2238
      %v2249 = vpack.c.b16 %v2241, %v2240
      %v2266 = vunpack.c.l.b16 %v1934
      %v2267 = vunpack.c.l.b16 %v1935
      %v2268 = vunpack.c.l.b16 %v1936
      %v2269 = vunpack.c.l.b16 %v1937
      %v2270 = vunpack.c.l.b16 %v1938
      %v2271 = vunpack.c.l.b16 %v1939
      %v2272 = vunpack.c.l.b16 %v1940
      %v2273 = vunpack.c.l.b16 %v1941
      %v2274 = vunpack.c.l.b16 %v1942
      %v2275 = vunpack.c.l.b16 %v1943
      %v2276 = vunpack.c.l.b16 %v1944
      %v2277 = vunpack.c.l.b16 %v1945
      %v2278 = vunpack.c.l.b16 %v1946
      %v2279 = vunpack.c.l.b16 %v1947
      %v2280 = vunpack.c.l.b16 %v1948
      %v2281 = vunpack.c.l.b16 %v1949
      %v2282 = vpack.c.b16 %v2267, %v2266
      %v2283 = vpack.c.b16 %v2269, %v2268
      %v2284 = vpack.c.b16 %v2271, %v2270
      %v2285 = vpack.c.b16 %v2273, %v2272
      %v2286 = vpack.c.b16 %v2275, %v2274
      %v2287 = vpack.c.b16 %v2277, %v2276
      %v2288 = vpack.c.b16 %v2279, %v2278
      %v2289 = vpack.c.b16 %v2281, %v2280
      %2290 = vrot.lane.b32.xlu0 %v2282, 12
      %v2291 = vpop.permute.xlu0 %2290
      %2292 = vrot.lane.b32.xlu0 %v2283, 12
      %v2293 = vpop.permute.xlu0 %2292
      %2294 = vrot.lane.b32.xlu0 %v2284, 12
      %v2295 = vpop.permute.xlu0 %2294
      %2296 = vrot.lane.b32.xlu0 %v2285, 12
      %v2297 = vpop.permute.xlu0 %2296
      %2298 = vrot.lane.b32.xlu0 %v2286, 12
      %v2299 = vpop.permute.xlu0 %2298
      %2300 = vrot.lane.b32.xlu0 %v2287, 12
      %v2301 = vpop.permute.xlu0 %2300
      %2302 = vrot.lane.b32.xlu0 %v2288, 12
      %v2303 = vpop.permute.xlu0 %2302
      %2304 = vrot.lane.b32.xlu0 %v2289, 12
      %v2305 = vpop.permute.xlu0 %2304
      %v2322 = vunpack.c.l.b16 %v2048
      %v2323 = vunpack.c.l.b16 %v2049
      %v2324 = vunpack.c.l.b16 %v2050
      %v2325 = vunpack.c.l.b16 %v2051
      %v2326 = vunpack.c.l.b16 %v2052
      %v2327 = vunpack.c.l.b16 %v2053
      %v2328 = vunpack.c.l.b16 %v2054
      %v2329 = vunpack.c.l.b16 %v2055
      %v2330 = vunpack.c.l.b16 %v2056
      %v2331 = vunpack.c.l.b16 %v2057
      %v2332 = vunpack.c.l.b16 %v2058
      %v2333 = vunpack.c.l.b16 %v2059
      %v2334 = vunpack.c.l.b16 %v2060
      %v2335 = vunpack.c.l.b16 %v2061
      %v2336 = vunpack.c.l.b16 %v2062
      %v2337 = vunpack.c.l.b16 %v2063
      %v2338 = vpack.c.b16 %v2323, %v2322
      %v2339 = vpack.c.b16 %v2325, %v2324
      %v2340 = vpack.c.b16 %v2327, %v2326
      %v2341 = vpack.c.b16 %v2329, %v2328
      %v2342 = vpack.c.b16 %v2331, %v2330
      %v2343 = vpack.c.b16 %v2333, %v2332
      %v2344 = vpack.c.b16 %v2335, %v2334
      %v2345 = vpack.c.b16 %v2337, %v2336
      %2346 = vrot.lane.b32.xlu0 %v2338, 24
      %v2347 = vpop.permute.xlu0 %2346
      %2348 = vrot.lane.b32.xlu0 %v2339, 24
      %v2349 = vpop.permute.xlu0 %2348
      %2350 = vrot.lane.b32.xlu0 %v2340, 24
      %v2351 = vpop.permute.xlu0 %2350
      %2352 = vrot.lane.b32.xlu0 %v2341, 24
      %v2353 = vpop.permute.xlu0 %2352
      %2354 = vrot.lane.b32.xlu0 %v2342, 24
      %v2355 = vpop.permute.xlu0 %2354
      %2356 = vrot.lane.b32.xlu0 %v2343, 24
      %v2357 = vpop.permute.xlu0 %2356
      %2358 = vrot.lane.b32.xlu0 %v2344, 24
      %v2359 = vpop.permute.xlu0 %2358
      %2360 = vrot.lane.b32.xlu0 %v2345, 24
      %v2361 = vpop.permute.xlu0 %2360
      %v2378 = vunpack.c.l.b16 %v2084
      %v2379 = vunpack.c.l.b16 %v2085
      %v2380 = vunpack.c.l.b16 %v2086
      %v2381 = vunpack.c.l.b16 %v2087
      %v2382 = vunpack.c.l.b16 %v2088
      %v2383 = vunpack.c.l.b16 %v2089
      %v2384 = vunpack.c.l.b16 %v2090
      %v2385 = vunpack.c.l.b16 %v2091
      %v2386 = vunpack.c.l.b16 %v2092
      %v2387 = vunpack.c.l.b16 %v2093
      %v2388 = vunpack.c.l.b16 %v2094
      %v2389 = vunpack.c.l.b16 %v2095
      %v2390 = vunpack.c.l.b16 %v2096
      %v2391 = vunpack.c.l.b16 %v2097
      %v2392 = vunpack.c.l.b16 %v2098
      %v2393 = vunpack.c.l.b16 %v2099
      %v2394 = vpack.c.b16 %v2379, %v2378
      %v2395 = vpack.c.b16 %v2381, %v2380
      %v2396 = vpack.c.b16 %v2383, %v2382
      %v2397 = vpack.c.b16 %v2385, %v2384
      %v2398 = vpack.c.b16 %v2387, %v2386
      %v2399 = vpack.c.b16 %v2389, %v2388
      %v2400 = vpack.c.b16 %v2391, %v2390
      %v2401 = vpack.c.b16 %v2393, %v2392
      %2402 = vrot.lane.b32.xlu0 %v2394, 36
      %v2403 = vpop.permute.xlu0 %2402
      %2404 = vrot.lane.b32.xlu0 %v2395, 36
      %v2405 = vpop.permute.xlu0 %2404
      %2406 = vrot.lane.b32.xlu0 %v2396, 36
      %v2407 = vpop.permute.xlu0 %2406
      %2408 = vrot.lane.b32.xlu0 %v2397, 36
      %v2409 = vpop.permute.xlu0 %2408
      %2410 = vrot.lane.b32.xlu0 %v2398, 36
      %v2411 = vpop.permute.xlu0 %2410
      %2412 = vrot.lane.b32.xlu0 %v2399, 36
      %v2413 = vpop.permute.xlu0 %2412
      %2414 = vrot.lane.b32.xlu0 %v2400, 36
      %v2415 = vpop.permute.xlu0 %2414
      %2416 = vrot.lane.b32.xlu0 %v2401, 36
      %v2417 = vpop.permute.xlu0 %2416
      %v2420 = vunpack.c.l.b16 %v2100
      %v2421 = vunpack.c.l.b16 %v2101
      %v2422 = vpack.c.b16 %v2421, %v2420
      %2423 = vrot.lane.b32.xlu0 %v2283, 48
      %v2424 = vpop.permute.xlu0 %2423
      %2425 = vrot.lane.b32.xlu0 %v2284, 48
      %v2426 = vpop.permute.xlu0 %2425
      %2427 = vrot.lane.b32.xlu0 %v2285, 48
      %v2428 = vpop.permute.xlu0 %2427
      %2429 = vrot.lane.b32.xlu0 %v2286, 48
      %v2430 = vpop.permute.xlu0 %2429
      %2431 = vrot.lane.b32.xlu0 %v2287, 48
      %v2432 = vpop.permute.xlu0 %2431
      %2433 = vrot.lane.b32.xlu0 %v2288, 48
      %v2434 = vpop.permute.xlu0 %2433
      %2435 = vrot.lane.b32.xlu0 %v2289, 48
      %v2436 = vpop.permute.xlu0 %2435
      %2437 = vrot.lane.b32.xlu0 %v2422, 48
      %v2438 = vpop.permute.xlu0 %2437
      %v2455 = vunpack.c.l.b16 %v2122
      %v2456 = vunpack.c.l.b16 %v2123
      %v2457 = vunpack.c.l.b16 %v2124
      %v2458 = vunpack.c.l.b16 %v2125
      %v2459 = vunpack.c.l.b16 %v2126
      %v2460 = vunpack.c.l.b16 %v2127
      %v2461 = vunpack.c.l.b16 %v2128
      %v2462 = vunpack.c.l.b16 %v2129
      %v2463 = vunpack.c.l.b16 %v2130
      %v2464 = vunpack.c.l.b16 %v2131
      %v2465 = vunpack.c.l.b16 %v2132
      %v2466 = vunpack.c.l.b16 %v2133
      %v2467 = vunpack.c.l.b16 %v2134
      %v2468 = vunpack.c.l.b16 %v2135
      %v2469 = vunpack.c.l.b16 %v2136
      %v2470 = vunpack.c.l.b16 %v2137
      %v2471 = vpack.c.b16 %v2456, %v2455
      %v2472 = vpack.c.b16 %v2458, %v2457
      %v2473 = vpack.c.b16 %v2460, %v2459
      %v2474 = vpack.c.b16 %v2462, %v2461
      %v2475 = vpack.c.b16 %v2464, %v2463
      %v2476 = vpack.c.b16 %v2466, %v2465
      %v2477 = vpack.c.b16 %v2468, %v2467
      %v2478 = vpack.c.b16 %v2470, %v2469
      %2479 = vrot.lane.b32.xlu0 %v2471, 60
      %v2480 = vpop.permute.xlu0 %2479
      %2481 = vrot.lane.b32.xlu0 %v2472, 60
      %v2482 = vpop.permute.xlu0 %2481
      %2483 = vrot.lane.b32.xlu0 %v2473, 60
      %v2484 = vpop.permute.xlu0 %2483
      %2485 = vrot.lane.b32.xlu0 %v2474, 60
      %v2486 = vpop.permute.xlu0 %2485
      %2487 = vrot.lane.b32.xlu0 %v2475, 60
      %v2488 = vpop.permute.xlu0 %2487
      %2489 = vrot.lane.b32.xlu0 %v2476, 60
      %v2490 = vpop.permute.xlu0 %2489
      %2491 = vrot.lane.b32.xlu0 %v2477, 60
      %v2492 = vpop.permute.xlu0 %2491
      %2493 = vrot.lane.b32.xlu0 %v2478, 60
      %v2494 = vpop.permute.xlu0 %2493
      %v2511 = vunpack.c.l.b16 %v2157
      %v2512 = vunpack.c.l.b16 %v2158
      %v2513 = vunpack.c.l.b16 %v2159
      %v2514 = vunpack.c.l.b16 %v2160
      %v2515 = vunpack.c.l.b16 %v2161
      %v2516 = vunpack.c.l.b16 %v2162
      %v2517 = vunpack.c.l.b16 %v2163
      %v2518 = vunpack.c.l.b16 %v2164
      %v2519 = vunpack.c.l.b16 %v2165
      %v2520 = vunpack.c.l.b16 %v2166
      %v2521 = vunpack.c.l.b16 %v2167
      %v2522 = vunpack.c.l.b16 %v2168
      %v2523 = vunpack.c.l.b16 %v2169
      %v2524 = vunpack.c.l.b16 %v2170
      %v2525 = vunpack.c.l.b16 %v2171
      %v2526 = vunpack.c.l.b16 %v2172
      %v2527 = vpack.c.b16 %v2512, %v2511
      %v2528 = vpack.c.b16 %v2514, %v2513
      %v2529 = vpack.c.b16 %v2516, %v2515
      %v2530 = vpack.c.b16 %v2518, %v2517
      %v2531 = vpack.c.b16 %v2520, %v2519
      %v2532 = vpack.c.b16 %v2522, %v2521
      %v2533 = vpack.c.b16 %v2524, %v2523
      %v2534 = vpack.c.b16 %v2526, %v2525
      %2535 = vrot.lane.b32.xlu0 %v2527, 72
      %v2536 = vpop.permute.xlu0 %2535
      %2537 = vrot.lane.b32.xlu0 %v2528, 72
      %v2538 = vpop.permute.xlu0 %2537
      %2539 = vrot.lane.b32.xlu0 %v2529, 72
      %v2540 = vpop.permute.xlu0 %2539
      %2541 = vrot.lane.b32.xlu0 %v2530, 72
      %v2542 = vpop.permute.xlu0 %2541
      %2543 = vrot.lane.b32.xlu0 %v2531, 72
      %v2544 = vpop.permute.xlu0 %2543
      %2545 = vrot.lane.b32.xlu0 %v2532, 72
      %v2546 = vpop.permute.xlu0 %2545
      %2547 = vrot.lane.b32.xlu0 %v2533, 72
      %v2548 = vpop.permute.xlu0 %2547
      %2549 = vrot.lane.b32.xlu0 %v2534, 72
      %v2550 = vpop.permute.xlu0 %2549
      %v2553 = vunpack.c.l.b16 %v2173
      %v2554 = vunpack.c.l.b16 %v2174
      %v2555 = vpack.c.b16 %v2554, %v2553
      %2556 = vrot.lane.b32.xlu0 %v2284, 84
      %v2557 = vpop.permute.xlu0 %2556
      %2558 = vrot.lane.b32.xlu0 %v2285, 84
      %v2559 = vpop.permute.xlu0 %2558
      %2560 = vrot.lane.b32.xlu0 %v2286, 84
      %v2561 = vpop.permute.xlu0 %2560
      %2562 = vrot.lane.b32.xlu0 %v2287, 84
      %v2563 = vpop.permute.xlu0 %2562
      %2564 = vrot.lane.b32.xlu0 %v2288, 84
      %v2565 = vpop.permute.xlu0 %2564
      %2566 = vrot.lane.b32.xlu0 %v2289, 84
      %v2567 = vpop.permute.xlu0 %2566
      %2568 = vrot.lane.b32.xlu0 %v2422, 84
      %v2569 = vpop.permute.xlu0 %2568
      %2570 = vrot.lane.b32.xlu0 %v2555, 84
      %v2571 = vpop.permute.xlu0 %2570
      %v2588 = vunpack.c.l.b16 %v2194
      %v2589 = vunpack.c.l.b16 %v2195
      %v2590 = vunpack.c.l.b16 %v2196
      %v2591 = vunpack.c.l.b16 %v2197
      %v2592 = vunpack.c.l.b16 %v2198
      %v2593 = vunpack.c.l.b16 %v2199
      %v2594 = vunpack.c.l.b16 %v2200
      %v2595 = vunpack.c.l.b16 %v2201
      %v2596 = vunpack.c.l.b16 %v2202
      %v2597 = vunpack.c.l.b16 %v2203
      %v2598 = vunpack.c.l.b16 %v2204
      %v2599 = vunpack.c.l.b16 %v2205
      %v2600 = vunpack.c.l.b16 %v2206
      %v2601 = vunpack.c.l.b16 %v2207
      %v2602 = vunpack.c.l.b16 %v2208
      %v2603 = vunpack.c.l.b16 %v2209
      %v2604 = vpack.c.b16 %v2589, %v2588
      %v2605 = vpack.c.b16 %v2591, %v2590
      %v2606 = vpack.c.b16 %v2593, %v2592
      %v2607 = vpack.c.b16 %v2595, %v2594
      %v2608 = vpack.c.b16 %v2597, %v2596
      %v2609 = vpack.c.b16 %v2599, %v2598
      %v2610 = vpack.c.b16 %v2601, %v2600
      %v2611 = vpack.c.b16 %v2603, %v2602
      %2612 = vrot.lane.b32.xlu0 %v2604, 96
      %v2613 = vpop.permute.xlu0 %2612
      %2614 = vrot.lane.b32.xlu0 %v2605, 96
      %v2615 = vpop.permute.xlu0 %2614
      %2616 = vrot.lane.b32.xlu0 %v2606, 96
      %v2617 = vpop.permute.xlu0 %2616
      %2618 = vrot.lane.b32.xlu0 %v2607, 96
      %v2619 = vpop.permute.xlu0 %2618
      %2620 = vrot.lane.b32.xlu0 %v2608, 96
      %v2621 = vpop.permute.xlu0 %2620
      %2622 = vrot.lane.b32.xlu0 %v2609, 96
      %v2623 = vpop.permute.xlu0 %2622
      %2624 = vrot.lane.b32.xlu0 %v2610, 96
      %v2625 = vpop.permute.xlu0 %2624
      %2626 = vrot.lane.b32.xlu0 %v2611, 96
      %v2627 = vpop.permute.xlu0 %2626
      %vm2628 = vcmask 97280
      %v2631 = vsel %vm2628, %v2242, %v2291
      %v2634 = vsel %vm2628, %v2243, %v2293
      %v2637 = vsel %vm2628, %v2244, %v2295
      %v2640 = vsel %vm2628, %v2245, %v2297
      %v2643 = vsel %vm2628, %v2246, %v2299
      %v2646 = vsel %vm2628, %v2247, %v2301
      %v2649 = vsel %vm2628, %v2248, %v2303
      %v2652 = vsel %vm2628, %v2249, %v2305
      %vm2653 = vcmask 195584
      %v2655 = vsel %vm2653, %v2631, %v2347
      %v2657 = vsel %vm2653, %v2634, %v2349
      %v2659 = vsel %vm2653, %v2637, %v2351
      %v2661 = vsel %vm2653, %v2640, %v2353
      %v2663 = vsel %vm2653, %v2643, %v2355
      %v2665 = vsel %vm2653, %v2646, %v2357
      %v2667 = vsel %vm2653, %v2649, %v2359
      %v2669 = vsel %vm2653, %v2652, %v2361
      %vm2670 = vcmask 293888
      %v2672 = vsel %vm2670, %v2655, %v2403
      %v2674 = vsel %vm2670, %v2657, %v2405
      %v2676 = vsel %vm2670, %v2659, %v2407
      %v2678 = vsel %vm2670, %v2661, %v2409
      %v2680 = vsel %vm2670, %v2663, %v2411
      %v2682 = vsel %vm2670, %v2665, %v2413
      %v2684 = vsel %vm2670, %v2667, %v2415
      %v2686 = vsel %vm2670, %v2669, %v2417
      %vm2687 = vcmask 392192
      %v2689 = vsel %vm2687, %v2672, %v2424
      %v2691 = vsel %vm2687, %v2674, %v2426
      %v2693 = vsel %vm2687, %v2676, %v2428
      %v2695 = vsel %vm2687, %v2678, %v2430
      %v2697 = vsel %vm2687, %v2680, %v2432
      %v2699 = vsel %vm2687, %v2682, %v2434
      %v2701 = vsel %vm2687, %v2684, %v2436
      %v2703 = vsel %vm2687, %v2686, %v2438
      %vm2704 = vcmask 490496
      %v2706 = vsel %vm2704, %v2689, %v2480
      %v2708 = vsel %vm2704, %v2691, %v2482
      %v2710 = vsel %vm2704, %v2693, %v2484
      %v2712 = vsel %vm2704, %v2695, %v2486
      %v2714 = vsel %vm2704, %v2697, %v2488
      %v2716 = vsel %vm2704, %v2699, %v2490
      %v2718 = vsel %vm2704, %v2701, %v2492
      %v2720 = vsel %vm2704, %v2703, %v2494
      %vm2721 = vcmask 588800
      %v2723 = vsel %vm2721, %v2706, %v2536
      %v2725 = vsel %vm2721, %v2708, %v2538
      %v2727 = vsel %vm2721, %v2710, %v2540
      %v2729 = vsel %vm2721, %v2712, %v2542
      %v2731 = vsel %vm2721, %v2714, %v2544
      %v2733 = vsel %vm2721, %v2716, %v2546
      %v2735 = vsel %vm2721, %v2718, %v2548
      %v2737 = vsel %vm2721, %v2720, %v2550
      %vm2738 = vcmask 687104
      %v2740 = vsel %vm2738, %v2723, %v2557
      %v2742 = vsel %vm2738, %v2725, %v2559
      %v2744 = vsel %vm2738, %v2727, %v2561
      %v2746 = vsel %vm2738, %v2729, %v2563
      %v2748 = vsel %vm2738, %v2731, %v2565
      %v2750 = vsel %vm2738, %v2733, %v2567
      %v2752 = vsel %vm2738, %v2735, %v2569
      %v2754 = vsel %vm2738, %v2737, %v2571
      %vm2755 = vcmask 785408
      %v2757 = vsel %vm2755, %v2740, %v2613
      %v2759 = vsel %vm2755, %v2742, %v2615
      %v2761 = vsel %vm2755, %v2744, %v2617
      %v2763 = vsel %vm2755, %v2746, %v2619
      %v2765 = vsel %vm2755, %v2748, %v2621
      %v2767 = vsel %vm2755, %v2750, %v2623
      %v2769 = vsel %vm2755, %v2752, %v2625
      %v2771 = vsel %vm2755, %v2754, %v2627
      %v2772 = vld [vmem:[%s12] sm:$0xf]
      %v2773 = vld [vmem:[%s12 + $0x4] sm:$0xf]
      %v2774 = vld [vmem:[%s12 + $0x8] sm:$0xf]
      %v2775 = vld [vmem:[%s12 + $0xc] sm:$0xf]
      %v2776 = vld [vmem:[%s12 + $0x10] sm:$0xf]
      %v2777 = vld [vmem:[%s12 + $0x14] sm:$0xf]
      %v2778 = vld [vmem:[%s12 + $0x18] sm:$0xf]
      %v2779 = vld [vmem:[%s12 + $0x1c] sm:$0xf]
      %v2780 = vld [vmem:[%s12 + $0x20] sm:$0xf]
      %v2781 = vld [vmem:[%s12 + $0x24] sm:$0xf]
      %v2782 = vld [vmem:[%s12 + $0x28] sm:$0xf]
      %v2783 = vld [vmem:[%s12 + $0x2c] sm:$0xf]
      %v2784 = vld [vmem:[%s12 + $0x30] sm:$0xf]
      %v2785 = vld [vmem:[%s12 + $0x34] sm:$0x3]
      %v2800 = vunpack.c.l.b16 %v2772
      %v2801 = vunpack.c.l.b16 %v2773
      %v2802 = vunpack.c.l.b16 %v2774
      %v2803 = vunpack.c.l.b16 %v2775
      %v2804 = vunpack.c.l.b16 %v2776
      %v2805 = vunpack.c.l.b16 %v2777
      %v2806 = vunpack.c.l.b16 %v2778
      %v2807 = vunpack.c.l.b16 %v2779
      %v2808 = vunpack.c.l.b16 %v2780
      %v2809 = vunpack.c.l.b16 %v2781
      %v2810 = vunpack.c.l.b16 %v2782
      %v2811 = vunpack.c.l.b16 %v2783
      %v2812 = vunpack.c.l.b16 %v2784
      %v2813 = vunpack.c.l.b16 %v2785
      %v2814 = vpack.c.b16 %v2801, %v2800
      %v2815 = vpack.c.b16 %v2803, %v2802
      %v2816 = vpack.c.b16 %v2805, %v2804
      %v2817 = vpack.c.b16 %v2807, %v2806
      %v2818 = vpack.c.b16 %v2809, %v2808
      %v2819 = vpack.c.b16 %v2811, %v2810
      %v2820 = vpack.c.b16 %v2813, %v2812
      %vm2827 = vcmask 883712
      %v2828 = vsel %vm2827, %v2757, 0
      %v2830 = vsel %vm2827, %v2759, 0
      %v2832 = vsel %vm2827, %v2761, 0
      %v2834 = vsel %vm2827, %v2763, 0
      %v2836 = vsel %vm2827, %v2765, 0
      %v2838 = vsel %vm2827, %v2767, 0
      %v2840 = vsel %vm2827, %v2769, 0
      %v2842 = vsel %vm2827, %v2771, 0
      %vm2844 = vcmask 1045504
      %v2846 = vsel %vm2844, %v2820, 0
      %2848 = vmatpush.bf16.msra.mxu0 0
      %2849 = vmatpush.bf16.msra.mxu0 %v2846
      %2850 = vmatpush.bf16.msra.mxu0 %v2819
      %2851 = vmatpush.bf16.msra.mxu0 %v2818
      %2852 = vmatpush.bf16.msra.mxu0 %v2817
      %2853 = vmatpush.bf16.msra.mxu0 %v2816
      %2854 = vmatpush.bf16.msra.mxu0 %v2815
      %2855 = vmatpush.bf16.msra.mxu0 %v2814
      %2856 = vmatmul.bf16.gmra.mxu0 %v2828
      %v2857 = vpop.f32.mrf.mxu0
      %v2858 = vadd.f32 0.0, %v2857
      %v2859 = vpop.f32.mrf.mxu0
      %v2860 = vadd.f32 0.0, %v2859
      %2861 = vmatmul.bf16.gmra.mxu0 %v2830
      %v2862 = vpop.f32.mrf.mxu0
      %v2863 = vadd.f32 0.0, %v2862
      %v2864 = vpop.f32.mrf.mxu0
      %v2865 = vadd.f32 0.0, %v2864
      %2866 = vmatmul.bf16.gmra.mxu0 %v2832
      %v2867 = vpop.f32.mrf.mxu0
      %v2868 = vadd.f32 0.0, %v2867
      %v2869 = vpop.f32.mrf.mxu0
      %v2870 = vadd.f32 0.0, %v2869
      %2871 = vmatmul.bf16.gmra.mxu0 %v2834
      %v2872 = vpop.f32.mrf.mxu0
      %v2873 = vadd.f32 0.0, %v2872
      %v2874 = vpop.f32.mrf.mxu0
      %v2875 = vadd.f32 0.0, %v2874
      %2876 = vmatmul.bf16.gmra.mxu0 %v2836
      %v2877 = vpop.f32.mrf.mxu0
      %v2878 = vadd.f32 0.0, %v2877
      %v2879 = vpop.f32.mrf.mxu0
      %v2880 = vadd.f32 0.0, %v2879
      %2881 = vmatmul.bf16.gmra.mxu0 %v2838
      %v2882 = vpop.f32.mrf.mxu0
      %v2883 = vadd.f32 0.0, %v2882
      %v2884 = vpop.f32.mrf.mxu0
      %v2885 = vadd.f32 0.0, %v2884
      %2886 = vmatmul.bf16.gmra.mxu0 %v2840
      %v2887 = vpop.f32.mrf.mxu0
      %v2888 = vadd.f32 0.0, %v2887
      %v2889 = vpop.f32.mrf.mxu0
      %v2890 = vadd.f32 0.0, %v2889
      %2891 = vmatmul.bf16.gmra.mxu0 %v2842
      %v2892 = vpop.f32.mrf.mxu0
      %v2893 = vadd.f32 0.0, %v2892
      %v2894 = vpop.f32.mrf.mxu0
      %v2895 = vadd.f32 0.0, %v2894
      %2896 = vdwg.mxu0
      %v2897 = vld [vmem:[%s13] sm:$0x1]
      %v2899 = vperm.slane %v2897, 0
      %v2901 = vmul.f32 %v2858, %v2899
      %v2902 = vmul.f32 %v2860, %v2899
      %v2903 = vmul.f32 %v2863, %v2899
      %v2904 = vmul.f32 %v2865, %v2899
      %v2905 = vmul.f32 %v2868, %v2899
      %v2906 = vmul.f32 %v2870, %v2899
      %v2907 = vmul.f32 %v2873, %v2899
      %v2908 = vmul.f32 %v2875, %v2899
      %v2909 = vmul.f32 %v2878, %v2899
      %v2910 = vmul.f32 %v2880, %v2899
      %v2911 = vmul.f32 %v2883, %v2899
      %v2912 = vmul.f32 %v2885, %v2899
      %v2913 = vmul.f32 %v2888, %v2899
      %v2914 = vmul.f32 %v2890, %v2899
      %v2915 = vmul.f32 %v2893, %v2899
      %v2916 = vmul.f32 %v2895, %v2899
      %v2917 = vld [vmem:[%s14] sm:$0x1]
      %v2919 = vperm.slane %v2917, 0
      %v2921 = vadd.f32 %v2901, %v2919
      %v2922 = vadd.f32 %v2902, %v2919
      %v2923 = vadd.f32 %v2903, %v2919
      %v2924 = vadd.f32 %v2904, %v2919
      %v2925 = vadd.f32 %v2905, %v2919
      %v2926 = vadd.f32 %v2906, %v2919
      %v2927 = vadd.f32 %v2907, %v2919
      %v2928 = vadd.f32 %v2908, %v2919
      %v2929 = vadd.f32 %v2909, %v2919
      %v2930 = vadd.f32 %v2910, %v2919
      %v2931 = vadd.f32 %v2911, %v2919
      %v2932 = vadd.f32 %v2912, %v2919
      %v2933 = vadd.f32 %v2913, %v2919
      %v2934 = vadd.f32 %v2914, %v2919
      %v2935 = vadd.f32 %v2915, %v2919
      %v2936 = vadd.f32 %v2916, %v2919
      %v2937 = vmax.f32 %v2921, 0.0
      %v2938 = vmax.f32 %v2922, 0.0
      %v2939 = vmax.f32 %v2923, 0.0
      %v2940 = vmax.f32 %v2924, 0.0
      %v2941 = vmax.f32 %v2925, 0.0
      %v2942 = vmax.f32 %v2926, 0.0
      %v2943 = vmax.f32 %v2927, 0.0
      %v2944 = vmax.f32 %v2928, 0.0
      %v2945 = vmax.f32 %v2929, 0.0
      %v2946 = vmax.f32 %v2930, 0.0
      %v2947 = vmax.f32 %v2931, 0.0
      %v2948 = vmax.f32 %v2932, 0.0
      %v2949 = vmax.f32 %v2933, 0.0
      %v2950 = vmax.f32 %v2934, 0.0
      %v2951 = vmax.f32 %v2935, 0.0
      %v2952 = vmax.f32 %v2936, 0.0
      %2953 = vst.msk [vmem:[%s660] sm:$0xff] %vm734, %v2937
      %2954 = vst.msk [vmem:[%s660 + $0x8] sm:$0xff] %vm734, %v2938
      %2955 = vst.msk [vmem:[%s660 + $0x10] sm:$0xff] %vm734, %v2939
      %2956 = vst.msk [vmem:[%s660 + $0x18] sm:$0xff] %vm734, %v2940
      %2957 = vst.msk [vmem:[%s660 + $0x20] sm:$0xff] %vm734, %v2941
      %2958 = vst.msk [vmem:[%s660 + $0x28] sm:$0xff] %vm734, %v2942
      %2959 = vst.msk [vmem:[%s660 + $0x30] sm:$0xff] %vm734, %v2943
      %2960 = vst.msk [vmem:[%s660 + $0x38] sm:$0xff] %vm734, %v2944
      %2961 = vst.msk [vmem:[%s660 + $0x40] sm:$0xff] %vm734, %v2945
      %2962 = vst.msk [vmem:[%s660 + $0x48] sm:$0xff] %vm734, %v2946
      %2963 = vst.msk [vmem:[%s660 + $0x50] sm:$0xff] %vm734, %v2947
      %2964 = vst.msk [vmem:[%s660 + $0x58] sm:$0xff] %vm734, %v2948
      %2965 = vst.msk [vmem:[%s660 + $0x60] sm:$0xff] %vm734, %v2949
      %2966 = vst.msk [vmem:[%s660 + $0x68] sm:$0xff] %vm734, %v2950
      %2967 = vst.msk [vmem:[%s660 + $0x70] sm:$0xff] %vm734, %v2951
      %2968 = vst.msk [vmem:[%s660 + $0x78] sm:$0xff] %vm734, %v2952
      %s2969 = smul.u32 16, %s31
      %p2970 = scmp.lt.s32.totalorder %s30, 1
      %s2971 = scalar_select %p2970, %s30, 1
      %p2972 = scmp.lt.s32.totalorder %s2969, 31
      %s2973 = scalar_select %p2972, %s2969, 31
      %s2974 = smul.addr %s2971, 32
      %s2975 = sadd.s32 %s2973, %s2974
      %s2976 = smul.addr %s2975, 8
      %s2977 = scalar_lea.vmem %s15, %s2976
      // Predicated region
      $region81: #{our_fe_forward.1} parent=79 // pred_check
        %p2978 = pneg %p410
      $region82: #{our_fe_forward.1} parent=79 // pred_check_branch
        %2980 = sbr.rel (%p2978) target = $region84
      $region83: #{our_fe_forward.1} parent=79 // pred_region
        %s2981 = smul.u32 16, %s31
      $region84: #{our_fe_forward.1} parent=79 // pred_fallthru
        _
    $region80: #{our_fe_forward.1} parent=5 // pred_fallthru
      _
    %p2982 = scmp.le.s32.totalorder 2, %s21
    // Predicated region
    $region85: #{our_fe_forward.1} parent=5 // pred_check
      %p2983 = pneg %p2982
    $region86: #{our_fe_forward.1} parent=5 // pred_check_branch
      %2985 = sbr.rel (%p2983) target = $region88
    $region87: #{our_fe_forward.1} parent=5 // pred_region
      %s2986 = ssub.s32 %s21, 2
      // Predicated region
      $region89: #{our_fe_forward.1} parent=87 // pred_check
        %p2987 = pneg %p416
      $region90: #{our_fe_forward.1} parent=87 // pred_check_branch
        %2989 = sbr.rel (%p2987) target = $region92
      $region91: #{our_fe_forward.1} parent=87 // pred_region
        %s2990 = smul.u32 16, %s33
        %p2991 = scmp.lt.s32.totalorder %s32, 1
        %s2992 = scalar_select %p2991, %s32, 1
        %p2993 = scmp.lt.s32.totalorder %s2990, 31
        %s2994 = scalar_select %p2993, %s2990, 31
        %s2995 = smul.addr %s2992, 32
        %s2996 = sadd.s32 %s2994, %s2995
        %s2997 = smul.addr %s2996, 8
        %s2998 = scalar_lea.vmem %s15, %s2997
      $region92: #{our_fe_forward.1} parent=87 // pred_fallthru
        _
    $region88: #{our_fe_forward.1} parent=5 // pred_fallthru
      _
  $region6: #{our_fe_forward.1} parent=0 // loop_footer
    %s25 = sadd.s32 1, %s21
  $region7: #{our_fe_forward.1} parent=0 // loop_footer_branch
    %20 = sbr.rel target = $region3
  $region8: #{our_fe_forward.1} parent=0 // loop_exit
    _

</llo_original>
